<compile_context>
chip_gen: v5e
topology: v5e:2x2
jax: 0.10.0
libtpu: 0.0.40
codegen_flags: <defaults>
</compile_context>

<pallas_src>
import functools

import jax
import jax.numpy as jnp
from jax.experimental import pallas as pl
from jax.experimental.pallas import tpu as pltpu

P_DROPOUT = 0.5

# Production tile sizes, budgeted for v7x's smaller VMEM (64 MiB phys / 32 MiB scoped):
#   2 x (TM x TK x 4B) x_f32 ~ 4 MB, 2 x (TM x TK x 4B) mask bits ~ 4 MB,
#   2 x (TK x 600 x 2B) w1_bf16 ~ 4.8 MB, TM x 600 x 4B accumulator ~ 0.6 MB,
#   resident w2/biases/outputs < 1 MB  =>  ~14 MB total, double-buffered.
TM_DEFAULT = 256   # batch tile (>= MXU rows on v5e/v6e/v7x)
TK_DEFAULT = 2048  # D0 reduction tile (encoder)
TN_DEFAULT = 2048  # D_out tile (decoder)


def _pad_axis(a, axis, multiple):
    pad = (-a.shape[axis]) % multiple
    if pad == 0:
        return a
    widths = [(0, 0)] * a.ndim
    widths[axis] = (0, pad)
    return jnp.pad(a, widths)


# ----------------------------- Encoder kernel -------------------------------


def _encoder_kernel(x_ref, bits_ref, w1_ref, b1_ref, w2mu_ref, w2lv_ref,
                    bmu_ref, blv_ref, eps_ref,
                    mu_ref, lv_ref, z_ref, kl_ref,
                    acc_ref, sq_ref, *, p, training):
    k = pl.program_id(1)

    @pl.when(k == 0)
    def _init():
        acc_ref[...] = jnp.zeros_like(acc_ref)
        sq_ref[...] = jnp.zeros_like(sq_ref)

    x = x_ref[...].astype(jnp.float32)
    # running sum of squares for the row L2 norm (F.normalize(x, p=2, dim=1))
    sq_ref[...] += jnp.sum(x * x, axis=-1, keepdims=True)

    if training:
        # Dropout keep-mask via integer threshold: P(bits >= p * 2^32) == 1 - p.
        # The 1/(1-p) inverted-dropout scale is hoisted past the matmul below.
        thr = jnp.uint32(min(int(round(p * 4294967296.0)), 4294967295))
        x = jnp.where(bits_ref[...] >= thr, x, 0.0)

    # first-layer partial matmul: bf16 operands on the MXU, f32 accumulation
    acc_ref[...] += jnp.dot(x.astype(jnp.bfloat16), w1_ref[...],
                            preferred_element_type=jnp.float32)

    @pl.when(k == pl.num_programs(1) - 1)
    def _finalize():
        # row scale = 1/max(||x||, 1e-12)  (== F.normalize), times 1/(1-p) for dropout
        inv_norm = 1.0 / jnp.maximum(jnp.sqrt(sq_ref[...]), 1e-12)
        if training:
            inv_norm = inv_norm * jnp.float32(1.0 / (1.0 - p))
        h = jnp.tanh(acc_ref[...] * inv_norm + b1_ref[...])

        # linear_2, pre-split into mu / logvar halves (== torch.chunk(dim=1))
        mu = jnp.dot(h, w2mu_ref[...], preferred_element_type=jnp.float32) + bmu_ref[...]
        lv = jnp.dot(h, w2lv_ref[...], preferred_element_type=jnp.float32) + blv_ref[...]
        mu_ref[...] = mu.astype(mu_ref.dtype)
        lv_ref[...] = lv.astype(lv_ref.dtype)

        # reparameterization and per-row KL sum
        std = jnp.exp(0.5 * lv)
        z = mu + eps_ref[...].astype(jnp.float32) * std if training else mu
        z_ref[...] = z.astype(z_ref.dtype)
        kl = 0.5 * jnp.sum(-lv + jnp.exp(lv) + mu * mu - 1.0, axis=-1, keepdims=True)
        kl_ref[...] = kl.astype(kl_ref.dtype)


def encoder_forward(x, bits, eps, enc, *, p=P_DROPOUT, training=True,
                    tm=TM_DEFAULT, tk=TK_DEFAULT):
    """Fused normalize + Encoder + reparameterize + per-row KL."""
    B, D0 = x.shape
    D1 = enc["w1"].shape[1]
    D2 = enc["w2_mu"].shape[1]

    tm = min(tm, B)
    tk = min(tk, D0)

    # Pad batch / feature axes to tile multiples. Zero rows/cols are inert
    # (contribute nothing to the matmul or the norm); padded rows are sliced off.
    x_p = _pad_axis(_pad_axis(x, 0, tm), 1, tk)
    bits_p = _pad_axis(_pad_axis(bits, 0, tm), 1, tk)
    eps_p = _pad_axis(eps, 0, tm)
    w1_p = _pad_axis(enc["w1"], 0, tk)      # no-op unless D0 % tk != 0
    Bp, D0p = x_p.shape
    grid = (Bp // tm, D0p // tk)            # reduction axis last

    kernel = functools.partial(_encoder_kernel, p=p, training=training)

    mu, logvar, z, kl_row = pl.pallas_call(
        kernel,
        out_shape=(jax.ShapeDtypeStruct((Bp, D2), x.dtype),      # mu
                   jax.ShapeDtypeStruct((Bp, D2), x.dtype),      # logvar
                   jax.ShapeDtypeStruct((Bp, D2), x.dtype),      # sampled z
                   jax.ShapeDtypeStruct((Bp, 1), jnp.float32)),  # per-row KL sum
        grid=grid,
        in_specs=[
            pl.BlockSpec((tm, tk), lambda i, k: (i, k)),    # x
            pl.BlockSpec((tm, tk), lambda i, k: (i, k)),    # dropout bits
            pl.BlockSpec((tk, D1), lambda i, k: (k, 0)),    # w1 (bf16)
            pl.BlockSpec((1, D1), lambda i, k: (0, 0)),     # b1
            pl.BlockSpec((D1, D2), lambda i, k: (0, 0)),    # w2_mu (resident)
            pl.BlockSpec((D1, D2), lambda i, k: (0, 0)),    # w2_lv (resident)
            pl.BlockSpec((1, D2), lambda i, k: (0, 0)),     # b_mu
            pl.BlockSpec((1, D2), lambda i, k: (0, 0)),     # b_lv
            pl.BlockSpec((tm, D2), lambda i, k: (i, 0)),    # epsilon
        ],
        out_specs=(
            pl.BlockSpec((tm, D2), lambda i, k: (i, 0)),
            pl.BlockSpec((tm, D2), lambda i, k: (i, 0)),
            pl.BlockSpec((tm, D2), lambda i, k: (i, 0)),
            pl.BlockSpec((tm, 1), lambda i, k: (i, 0)),
        ),
        scratch_shapes=[pltpu.VMEM((tm, D1), jnp.float32),   # (mask*x) @ W1 accumulator
                        pltpu.VMEM((tm, 1), jnp.float32)],   # sum-of-squares accumulator
        compiler_params=pltpu.CompilerParams(
            dimension_semantics=("parallel", "arbitrary"),
            vmem_limit_bytes=32 * 1024 * 1024),
    )(x_p, bits_p, w1_p, enc["b1"], enc["w2_mu"], enc["w2_lv"],
      enc["b_mu"], enc["b_lv"], eps_p)

    return mu[:B], logvar[:B], z[:B], kl_row[:B]


# ----------------------------- Decoder kernel -------------------------------


def _decoder_kernel(z_ref, w3_ref, b3_ref, w4_ref, b4_ref, out_ref, h_ref):
    @pl.when(pl.program_id(1) == 0)
    def _hidden():
        h = jnp.dot(z_ref[...].astype(jnp.float32), w3_ref[...],
                    preferred_element_type=jnp.float32) + b3_ref[...]
        h_ref[...] = jnp.tanh(h)

    out = jnp.dot(h_ref[...].astype(jnp.bfloat16), w4_ref[...],
                  preferred_element_type=jnp.float32) + b4_ref[...]
    out_ref[...] = out.astype(out_ref.dtype)


def decoder_forward(z, dec, *, tm=TM_DEFAULT, tn=TN_DEFAULT):
    B, D2 = z.shape
    D1 = dec["w3"].shape[1]
    Dout = dec["w4"].shape[1]

    tm = min(tm, B)
    tn = min(tn, Dout)

    z_p = _pad_axis(z, 0, tm)
    w4_p = _pad_axis(dec["w4"], 1, tn)      # no-op unless Dout % tn != 0
    b4_p = _pad_axis(dec["b4"], 1, tn)
    Bp = z_p.shape[0]
    Doutp = w4_p.shape[1]
    grid = (Bp // tm, Doutp // tn)

    logits = pl.pallas_call(
        _decoder_kernel,
        out_shape=jax.ShapeDtypeStruct((Bp, Doutp), z.dtype),
        grid=grid,
        in_specs=[
            pl.BlockSpec((tm, D2), lambda i, j: (i, 0)),    # z (resident per i)
            pl.BlockSpec((D2, D1), lambda i, j: (0, 0)),    # w3 (resident)
            pl.BlockSpec((1, D1), lambda i, j: (0, 0)),     # b3
            pl.BlockSpec((D1, tn), lambda i, j: (0, j)),    # w4 (bf16, streamed)
            pl.BlockSpec((1, tn), lambda i, j: (0, j)),     # b4
        ],
        out_specs=pl.BlockSpec((tm, tn), lambda i, j: (i, j)),
        scratch_shapes=[pltpu.VMEM((tm, D1), jnp.float32)],  # tanh hidden state
        compiler_params=pltpu.CompilerParams(
            dimension_semantics=("parallel", "arbitrary"),
            vmem_limit_bytes=32 * 1024 * 1024),
    )(z_p, dec["w3"], dec["b3"], w4_p, b4_p)

    return logits[:B, :Dout]


# ------------------------------- Parameters ---------------------------------


def init_params(key, encoder_dims=(20108, 600, 200), decoder_dims=(200, 600, 20108)):
    """Xavier-uniform weights, N(0, 0.001) biases, matching the PyTorch module.

    All per-call glue (torch.chunk split of linear_2, bias reshapes, bf16 cast of
    the big weights) is done here once, so the forward wrappers launch directly.
    """
    d0, d1, d2 = encoder_dims
    e0, e1, e2 = decoder_dims
    ks = jax.random.split(key, 8)

    def xavier(k, fan_in, fan_out):
        bound = (6.0 / (fan_in + fan_out)) ** 0.5
        return jax.random.uniform(k, (fan_in, fan_out), jnp.float32, -bound, bound)

    w1 = xavier(ks[0], d0, d1)
    b1 = 0.001 * jax.random.normal(ks[1], (d1,), jnp.float32)
    w2 = xavier(ks[2], d1, 2 * d2)
    b2 = 0.001 * jax.random.normal(ks[3], (2 * d2,), jnp.float32)
    w3 = xavier(ks[4], e0, e1)
    b3 = 0.001 * jax.random.normal(ks[5], (e1,), jnp.float32)
    w4 = xavier(ks[6], e1, e2)
    b4 = 0.001 * jax.random.normal(ks[7], (e2,), jnp.float32)

    enc = dict(
        w1=w1.astype(jnp.bfloat16),                    # big weight streamed as bf16
        b1=b1.reshape(1, d1),
        w2_mu=w2[:, :d2], w2_lv=w2[:, d2:],            # torch.chunk(dim=1) pre-split
        b_mu=b2[:d2].reshape(1, d2), b_lv=b2[d2:].reshape(1, d2),
    )
    dec = dict(
        w3=w3, b3=b3.reshape(1, e1),
        w4=w4.astype(jnp.bfloat16),                    # big weight streamed as bf16
        b4=b4.reshape(1, e2),
    )
    return dict(enc=enc, dec=dec)


# ------------------------------ MultiVAE forward ----------------------------


def multivae_forward(x, params, key, *, dropout=P_DROPOUT, training=True,
                     tm=TM_DEFAULT, tk=TK_DEFAULT, tn=TN_DEFAULT):
    """MultiVAE.forward: returns (logits, KL)."""
    B, D0 = x.shape
    D2 = params["enc"]["w2_mu"].shape[1]

    # TODO(synk): PyTorch's dropout / randn RNG streams cannot be bit-reproduced;
    # same distributions via JAX RNG. Random bits are generated host-side because
    # in-kernel pltpu.prng_* has no interpret/CPU lowering.
    kb, ke = jax.random.split(key)
    bits = jax.random.bits(kb, (B, D0), dtype=jnp.uint32)
    eps = jax.random.normal(ke, (B, D2), jnp.float32)

    mu, logvar, z, kl_row = encoder_forward(
        x, bits, eps, params["enc"], p=dropout, training=training, tm=tm, tk=tk)
    kl = jnp.mean(kl_row[:, 0])          # tiny (B,) reduction kept in plain JAX
    logits = decoder_forward(z, params["dec"], tm=tm, tn=tn)
    return logits, kl


if __name__ == "__main__":
    # Scaled-down MultiVAE dims (original: enc [20108, 600, 200], dec [200, 600, 20108]).
    encoder_dims = (512, 256, 128)
    decoder_dims = (128, 256, 512)
    B = 16

    key = jax.random.PRNGKey(0)
    kx, kp, kr = jax.random.split(key, 3)
    x = jax.random.uniform(kx, (B, encoder_dims[0]), jnp.float32)
    params = init_params(kp, encoder_dims, decoder_dims)

    # Small tiles so the demo exercises real multi-step grids (2x2 / 2x2).
    logits, kl = multivae_forward(x, params, kr, training=True, tm=8, tk=256, tn=256)
    jax.block_until_ready((logits, kl))

    assert logits.shape == (B, decoder_dims[2]) and logits.dtype == x.dtype
    assert kl.shape == () and bool(jnp.isfinite(kl))
    assert bool(jnp.all(jnp.isfinite(logits)))
    print("KERNEL_OK")
</pallas_src>

<mosaic_0001>
module attributes {stable_mosaic.version = 11 : i64} {
  func.func @_encoder_kernel(%arg0: i32, %arg1: i32, %arg2: memref<8x256xf32, #tpu.memory_space<vmem>>, %arg3: memref<8x256xi32, #tpu.memory_space<vmem>>, %arg4: memref<256x256xbf16, #tpu.memory_space<vmem>>, %arg5: memref<1x256xf32, #tpu.memory_space<vmem>>, %arg6: memref<256x128xf32, #tpu.memory_space<vmem>>, %arg7: memref<256x128xf32, #tpu.memory_space<vmem>>, %arg8: memref<1x128xf32, #tpu.memory_space<vmem>>, %arg9: memref<1x128xf32, #tpu.memory_space<vmem>>, %arg10: memref<8x128xf32, #tpu.memory_space<vmem>>, %arg11: memref<8x128xf32, #tpu.memory_space<vmem>>, %arg12: memref<8x128xf32, #tpu.memory_space<vmem>>, %arg13: memref<8x128xf32, #tpu.memory_space<vmem>>, %arg14: memref<8x1xf32, #tpu.memory_space<vmem>>, %arg15: memref<8x256xf32, #tpu.memory_space<vmem>>, %arg16: memref<8x1xf32, #tpu.memory_space<vmem>>) attributes {dimension_semantics = [#tpu.dimension_semantics<parallel>, #tpu.dimension_semantics<arbitrary>], iteration_bounds = array<i64: 2, 2>, scalar_prefetch = 0 : i64, scratch_operands = 2 : i64, tpu.core_type = #tpu.core_type<tc>, window_params = [{transform_indices = @transform_0, window_bounds = array<i64: 8, 256>}, {transform_indices = @transform_1, window_bounds = array<i64: 8, 256>}, {transform_indices = @transform_2, window_bounds = array<i64: 256, 256>}, {pipeline_mode = #tpu.pipeline_mode<synchronous>, transform_indices = @transform_3, window_bounds = array<i64: 1, 256>}, {pipeline_mode = #tpu.pipeline_mode<synchronous>, transform_indices = @transform_4, window_bounds = array<i64: 256, 128>}, {pipeline_mode = #tpu.pipeline_mode<synchronous>, transform_indices = @transform_5, window_bounds = array<i64: 256, 128>}, {pipeline_mode = #tpu.pipeline_mode<synchronous>, transform_indices = @transform_6, window_bounds = array<i64: 1, 128>}, {pipeline_mode = #tpu.pipeline_mode<synchronous>, transform_indices = @transform_7, window_bounds = array<i64: 1, 128>}, {transform_indices = @transform_8, window_bounds = array<i64: 8, 128>}, {transform_indices = @transform_9, window_bounds = array<i64: 8, 128>}, {transform_indices = @transform_10, window_bounds = array<i64: 8, 128>}, {transform_indices = @transform_11, window_bounds = array<i64: 8, 128>}, {transform_indices = @transform_12, window_bounds = array<i64: 8, 1>}]} {
    %c0_i32 = arith.constant 0 : i32
    %0 = arith.cmpi eq, %arg1, %c0_i32 : i32
    %1 = arith.extui %0 : i1 to i32
    %c0_i32_0 = arith.constant 0 : i32
    %2 = arith.cmpi ne, %1, %c0_i32_0 : i32
    scf.if %2 {
      %cst_17 = arith.constant 0.000000e+00 : f32
      %24 = vector.broadcast %cst_17 : f32 to vector<8x256xf32>
      %c0_18 = arith.constant 0 : index
      %c0_19 = arith.constant 0 : index
      %25 = vector.load %arg15[%c0_18, %c0_19] : memref<8x256xf32, #tpu.memory_space<vmem>>, vector<8x256xf32>
      tpu.vector_store %arg15[%c0_18, %c0_19], %24 {strides = array<i32>} : memref<8x256xf32, #tpu.memory_space<vmem>>, vector<8x256xf32>,
      %cst_20 = arith.constant 0.000000e+00 : f32
      %26 = vector.broadcast %cst_20 : f32 to vector<8x1xf32>
      %c0_21 = arith.constant 0 : index
      %c0_22 = arith.constant 0 : index
      %27 = vector.load %arg16[%c0_21, %c0_22] : memref<8x1xf32, #tpu.memory_space<vmem>>, vector<8x1xf32>
      tpu.vector_store %arg16[%c0_21, %c0_22], %26 {strides = array<i32>} : memref<8x1xf32, #tpu.memory_space<vmem>>, vector<8x1xf32>,
    } else {
    }
    %c0 = arith.constant 0 : index
    %c0_1 = arith.constant 0 : index
    %3 = vector.load %arg2[%c0, %c0_1] : memref<8x256xf32, #tpu.memory_space<vmem>>, vector<8x256xf32>
    %c0_2 = arith.constant 0 : index
    %c0_3 = arith.constant 0 : index
    %4 = vector.load %arg16[%c0_2, %c0_3] : memref<8x1xf32, #tpu.memory_space<vmem>>, vector<8x1xf32>
    %5 = arith.mulf %3, %3 : vector<8x256xf32>
    %cst = arith.constant dense<0.000000e+00> : vector<8xf32>
    %6 = vector.multi_reduction <add>, %5, %cst [1] : vector<8x256xf32> to vector<8xf32>
    %7 = vector.shape_cast %6 : vector<8xf32> to vector<8x1xf32>
    %8 = arith.addf %4, %7 : vector<8x1xf32>
    %c0_4 = arith.constant 0 : index
    %c0_5 = arith.constant 0 : index
    %9 = vector.load %arg16[%c0_4, %c0_5] : memref<8x1xf32, #tpu.memory_space<vmem>>, vector<8x1xf32>
    tpu.vector_store %arg16[%c0_4, %c0_5], %8 {strides = array<i32>} : memref<8x1xf32, #tpu.memory_space<vmem>>, vector<8x1xf32>,
    %c0_6 = arith.constant 0 : index
    %c0_7 = arith.constant 0 : index
    %10 = vector.load %arg3[%c0_6, %c0_7] : memref<8x256xi32, #tpu.memory_space<vmem>>, vector<8x256xi32>
    %c-2147483648_i32 = arith.constant -2147483648 : i32
    %11 = vector.broadcast %c-2147483648_i32 : i32 to vector<8x256xi32>
    %12 = arith.cmpi uge, %10, %11 : vector<8x256xi32>
    %cst_8 = arith.constant 0.000000e+00 : f32
    %13 = vector.broadcast %cst_8 : f32 to vector<8x256xf32>
    %14 = arith.select %12, %3, %13 : vector<8x256xi1>, vector<8x256xf32>
    %c0_9 = arith.constant 0 : index
    %c0_10 = arith.constant 0 : index
    %15 = vector.load %arg15[%c0_9, %c0_10] : memref<8x256xf32, #tpu.memory_space<vmem>>, vector<8x256xf32>
    %16 = arith.truncf %14 : vector<8x256xf32> to vector<8x256xbf16>
    %c0_11 = arith.constant 0 : index
    %c0_12 = arith.constant 0 : index
    %17 = vector.load %arg4[%c0_11, %c0_12] : memref<256x256xbf16, #tpu.memory_space<vmem>>, vector<256x256xbf16>
    %cst_13 = arith.constant dense<0.000000e+00> : vector<8x256xf32>
    %18 = tpu.matmul %16, %17, %cst_13 {dimension_numbers = #tpu.dot_dimension_numbers<[1], [0], [0], [1], [0, 0, 1, 1], [], []>} : vector<8x256xbf16>, vector<256x256xbf16>, vector<8x256xf32> -> vector<8x256xf32>
    %19 = arith.addf %15, %18 : vector<8x256xf32>
    %c0_14 = arith.constant 0 : index
    %c0_15 = arith.constant 0 : index
    %20 = vector.load %arg15[%c0_14, %c0_15] : memref<8x256xf32, #tpu.memory_space<vmem>>, vector<8x256xf32>
    tpu.vector_store %arg15[%c0_14, %c0_15], %19 {strides = array<i32>} : memref<8x256xf32, #tpu.memory_space<vmem>>, vector<8x256xf32>,
    %c1_i32 = arith.constant 1 : i32
    %21 = arith.cmpi eq, %arg1, %c1_i32 : i32
    %22 = arith.extui %21 : i1 to i32
    %c0_i32_16 = arith.constant 0 : i32
    %23 = arith.cmpi ne, %22, %c0_i32_16 : i32
    scf.if %23 {
      %c0_17 = arith.constant 0 : index
      %c0_18 = arith.constant 0 : index
      %24 = vector.load %arg16[%c0_17, %c0_18] : memref<8x1xf32, #tpu.memory_space<vmem>>, vector<8x1xf32>
      %25 = math.sqrt %24 : vector<8x1xf32>
      %cst_19 = arith.constant 9.99999996E-13 : f32
      %26 = vector.broadcast %cst_19 : f32 to vector<8x1xf32>
      %27 = arith.maximumf %25, %26 : vector<8x1xf32>
      %cst_20 = arith.constant 1.000000e+00 : f32
      %28 = vector.broadcast %cst_20 : f32 to vector<8x1xf32>
      %29 = arith.divf %28, %27 : vector<8x1xf32>
      %cst_21 = arith.constant 2.000000e+00 : f32
      %30 = vector.broadcast %cst_21 : f32 to vector<8x1xf32>
      %31 = arith.mulf %29, %30 : vector<8x1xf32>
      %c0_22 = arith.constant 0 : index
      %c0_23 = arith.constant 0 : index
      %32 = vector.load %arg15[%c0_22, %c0_23] : memref<8x256xf32, #tpu.memory_space<vmem>>, vector<8x256xf32>
      %33 = vector.broadcast %31 : vector<8x1xf32> to vector<8x256xf32>
      %34 = arith.mulf %32, %33 : vector<8x256xf32>
      %c0_24 = arith.constant 0 : index
      %c0_25 = arith.constant 0 : index
      %35 = vector.load %arg5[%c0_24, %c0_25] : memref<1x256xf32, #tpu.memory_space<vmem>>, vector<1x256xf32>
      %36 = vector.broadcast %35 : vector<1x256xf32> to vector<8x256xf32>
      %37 = arith.addf %34, %36 : vector<8x256xf32>
      %38 = math.tanh %37 : vector<8x256xf32>
      %c0_26 = arith.constant 0 : index
      %c0_27 = arith.constant 0 : index
      %39 = vector.load %arg6[%c0_26, %c0_27] : memref<256x128xf32, #tpu.memory_space<vmem>>, vector<256x128xf32>
      %cst_28 = arith.constant dense<0.000000e+00> : vector<8x128xf32>
      %40 = tpu.matmul %38, %39, %cst_28 {dimension_numbers = #tpu.dot_dimension_numbers<[1], [0], [0], [1], [0, 0, 1, 1], [], []>} : vector<8x256xf32>, vector<256x128xf32>, vector<8x128xf32> -> vector<8x128xf32>
      %c0_29 = arith.constant 0 : index
      %c0_30 = arith.constant 0 : index
      %41 = vector.load %arg8[%c0_29, %c0_30] : memref<1x128xf32, #tpu.memory_space<vmem>>, vector<1x128xf32>
      %42 = vector.broadcast %41 : vector<1x128xf32> to vector<8x128xf32>
      %43 = arith.addf %40, %42 : vector<8x128xf32>
      %c0_31 = arith.constant 0 : index
      %c0_32 = arith.constant 0 : index
      %44 = vector.load %arg7[%c0_31, %c0_32] : memref<256x128xf32, #tpu.memory_space<vmem>>, vector<256x128xf32>
      %cst_33 = arith.constant dense<0.000000e+00> : vector<8x128xf32>
      %45 = tpu.matmul %38, %44, %cst_33 {dimension_numbers = #tpu.dot_dimension_numbers<[1], [0], [0], [1], [0, 0, 1, 1], [], []>} : vector<8x256xf32>, vector<256x128xf32>, vector<8x128xf32> -> vector<8x128xf32>
      %c0_34 = arith.constant 0 : index
      %c0_35 = arith.constant 0 : index
      %46 = vector.load %arg9[%c0_34, %c0_35] : memref<1x128xf32, #tpu.memory_space<vmem>>, vector<1x128xf32>
      %47 = vector.broadcast %46 : vector<1x128xf32> to vector<8x128xf32>
      %48 = arith.addf %45, %47 : vector<8x128xf32>
      %c0_36 = arith.constant 0 : index
      %c0_37 = arith.constant 0 : index
      %49 = vector.load %arg11[%c0_36, %c0_37] : memref<8x128xf32, #tpu.memory_space<vmem>>, vector<8x128xf32>
      tpu.vector_store %arg11[%c0_36, %c0_37], %43 {strides = array<i32>} : memref<8x128xf32, #tpu.memory_space<vmem>>, vector<8x128xf32>,
      %c0_38 = arith.constant 0 : index
      %c0_39 = arith.constant 0 : index
      %50 = vector.load %arg12[%c0_38, %c0_39] : memref<8x128xf32, #tpu.memory_space<vmem>>, vector<8x128xf32>
      tpu.vector_store %arg12[%c0_38, %c0_39], %48 {strides = array<i32>} : memref<8x128xf32, #tpu.memory_space<vmem>>, vector<8x128xf32>,
      %cst_40 = arith.constant 5.000000e-01 : f32
      %51 = vector.broadcast %cst_40 : f32 to vector<8x128xf32>
      %52 = arith.mulf %51, %48 : vector<8x128xf32>
      %53 = math.exp %52 : vector<8x128xf32>
      %c0_41 = arith.constant 0 : index
      %c0_42 = arith.constant 0 : index
      %54 = vector.load %arg10[%c0_41, %c0_42] : memref<8x128xf32, #tpu.memory_space<vmem>>, vector<8x128xf32>
      %55 = arith.mulf %54, %53 : vector<8x128xf32>
      %56 = arith.addf %43, %55 : vector<8x128xf32>
      %c0_43 = arith.constant 0 : index
      %c0_44 = arith.constant 0 : index
      %57 = vector.load %arg13[%c0_43, %c0_44] : memref<8x128xf32, #tpu.memory_space<vmem>>, vector<8x128xf32>
      tpu.vector_store %arg13[%c0_43, %c0_44], %56 {strides = array<i32>} : memref<8x128xf32, #tpu.memory_space<vmem>>, vector<8x128xf32>,
      %cst_45 = arith.constant 0.000000e+00 : f32
      %58 = vector.broadcast %cst_45 : f32 to vector<8x128xf32>
      %59 = arith.subf %58, %48 : vector<8x128xf32>
      %60 = math.exp %48 : vector<8x128xf32>
      %61 = arith.addf %59, %60 : vector<8x128xf32>
      %62 = arith.mulf %43, %43 : vector<8x128xf32>
      %63 = arith.addf %61, %62 : vector<8x128xf32>
      %cst_46 = arith.constant 1.000000e+00 : f32
      %64 = vector.broadcast %cst_46 : f32 to vector<8x128xf32>
      %65 = arith.subf %63, %64 : vector<8x128xf32>
      %cst_47 = arith.constant dense<0.000000e+00> : vector<8xf32>
      %66 = vector.multi_reduction <add>, %65, %cst_47 [1] : vector<8x128xf32> to vector<8xf32>
      %67 = vector.shape_cast %66 : vector<8xf32> to vector<8x1xf32>
      %cst_48 = arith.constant 5.000000e-01 : f32
      %68 = vector.broadcast %cst_48 : f32 to vector<8x1xf32>
      %69 = arith.mulf %68, %67 : vector<8x1xf32>
      %c0_49 = arith.constant 0 : index
      %c0_50 = arith.constant 0 : index
      %70 = vector.load %arg14[%c0_49, %c0_50] : memref<8x1xf32, #tpu.memory_space<vmem>>, vector<8x1xf32>
      tpu.vector_store %arg14[%c0_49, %c0_50], %69 {strides = array<i32>} : memref<8x1xf32, #tpu.memory_space<vmem>>, vector<8x1xf32>,
    } else {
    }
    return
  }
  func.func @transform_0(%arg0: i32, %arg1: i32) -> (i32, i32) {
    %c0_i32 = arith.constant 0 : i32
    return %arg0, %arg1 : i32, i32
  }
  func.func @transform_1(%arg0: i32, %arg1: i32) -> (i32, i32) {
    %c0_i32 = arith.constant 0 : i32
    return %arg0, %arg1 : i32, i32
  }
  func.func @transform_2(%arg0: i32, %arg1: i32) -> (i32, i32) {
    %c0_i32 = arith.constant 0 : i32
    %c0_i32_0 = arith.constant 0 : i32
    return %arg1, %c0_i32 : i32, i32
  }
  func.func @transform_3(%arg0: i32, %arg1: i32) -> (i32, i32) {
    %c0_i32 = arith.constant 0 : i32
    %c0_i32_0 = arith.constant 0 : i32
    %c0_i32_1 = arith.constant 0 : i32
    return %c0_i32, %c0_i32_0 : i32, i32
  }
  func.func @transform_4(%arg0: i32, %arg1: i32) -> (i32, i32) {
    %c0_i32 = arith.constant 0 : i32
    %c0_i32_0 = arith.constant 0 : i32
    %c0_i32_1 = arith.constant 0 : i32
    return %c0_i32, %c0_i32_0 : i32, i32
  }
  func.func @transform_5(%arg0: i32, %arg1: i32) -> (i32, i32) {
    %c0_i32 = arith.constant 0 : i32
    %c0_i32_0 = arith.constant 0 : i32
    %c0_i32_1 = arith.constant 0 : i32
    return %c0_i32, %c0_i32_0 : i32, i32
  }
  func.func @transform_6(%arg0: i32, %arg1: i32) -> (i32, i32) {
    %c0_i32 = arith.constant 0 : i32
    %c0_i32_0 = arith.constant 0 : i32
    %c0_i32_1 = arith.constant 0 : i32
    return %c0_i32, %c0_i32_0 : i32, i32
  }
  func.func @transform_7(%arg0: i32, %arg1: i32) -> (i32, i32) {
    %c0_i32 = arith.constant 0 : i32
    %c0_i32_0 = arith.constant 0 : i32
    %c0_i32_1 = arith.constant 0 : i32
    return %c0_i32, %c0_i32_0 : i32, i32
  }
  func.func @transform_8(%arg0: i32, %arg1: i32) -> (i32, i32) {
    %c0_i32 = arith.constant 0 : i32
    %c0_i32_0 = arith.constant 0 : i32
    return %arg0, %c0_i32 : i32, i32
  }
  func.func @transform_9(%arg0: i32, %arg1: i32) -> (i32, i32) {
    %c0_i32 = arith.constant 0 : i32
    %c0_i32_0 = arith.constant 0 : i32
    return %arg0, %c0_i32 : i32, i32
  }
  func.func @transform_10(%arg0: i32, %arg1: i32) -> (i32, i32) {
    %c0_i32 = arith.constant 0 : i32
    %c0_i32_0 = arith.constant 0 : i32
    return %arg0, %c0_i32 : i32, i32
  }
  func.func @transform_11(%arg0: i32, %arg1: i32) -> (i32, i32) {
    %c0_i32 = arith.constant 0 : i32
    %c0_i32_0 = arith.constant 0 : i32
    return %arg0, %c0_i32 : i32, i32
  }
  func.func @transform_12(%arg0: i32, %arg1: i32) -> (i32, i32) {
    %c0_i32 = arith.constant 0 : i32
    %c0_i32_0 = arith.constant 0 : i32
    return %arg0, %c0_i32 : i32, i32
  }
}

</mosaic_0001>

<llo_original>
// kernel: tpu_custom_call.1
$region0: #{tpu_custom_call.1}
  #allocation0 [shape = 'u32[]', space=smem, size = 0x4, offset = 0x4, fixed_abs, tag = 'smem constant byte address 0x4 - core index']
  #allocation1 [shape = 'u32[72,128]{1,0:T(1,128)}', space=vmem, size = 0x9000, scoped, tag = 'internal scratch']
  #allocation2 [shape = 'f32[8,256]{1,0:T(8,128)}', space=vmem, size = 0x2000, scoped, tag = 'scratch operand']
  #allocation3 [shape = 'f32[8,1]{1,0:T(8,128)}', space=vmem, size = 0x1000, scoped, tag = 'scratch operand']
  %s0 = inlined_call_operand.hbm [shape: f32[16,512], index: 0, kind: input, shape index: {}]
  %s1 = inlined_call_operand.hbm [shape: u32[16,512], index: 1, kind: input, shape index: {}]
  %s2 = inlined_call_operand.hbm [shape: bf16[512,256], index: 2, kind: input, shape index: {}]
  %s3 = inlined_call_operand.vmem [shape: f32[1,256], index: 3, kind: input, shape index: {}]
  %s4 = inlined_call_operand.hbm [shape: f32[256,128], index: 4, kind: input, shape index: {}]
  %s5 = inlined_call_operand.hbm [shape: f32[256,128], index: 5, kind: input, shape index: {}]
  %s6 = inlined_call_operand.vmem [shape: f32[1,128], index: 6, kind: input, shape index: {}]
  %s7 = inlined_call_operand.vmem [shape: f32[1,128], index: 7, kind: input, shape index: {}]
  %s8 = inlined_call_operand.hbm [shape: f32[16,128], index: 8, kind: input, shape index: {}]
  %s9 = inlined_call_operand.hbm [shape: f32[16,128], index: 9, kind: output, shape index: {0}]
  %s10 = inlined_call_operand.hbm [shape: f32[16,128], index: 10, kind: output, shape index: {1}]
  %s11 = inlined_call_operand.hbm [shape: f32[16,128], index: 11, kind: output, shape index: {2}]
  %s12 = inlined_call_operand.vmem [shape: f32[16,1], index: 12, kind: output, shape index: {3}]
  %13 = xla_tuple %s9, %s10, %s11, %s12
  %s14 = sld [smem:[#allocation0]]
  $region125: #{tpu_custom_call.1} parent=0
    _
  %s16 = ssub.s32 1, %s14
  %s17 = scalar_select 0, %s16, %s14
  $region1: #{tpu_custom_call.1} parent=0
    #allocation4 [shape = 'u8[16384]{0}', space=vmem, size = 0x4000, scoped, tag = 'input window, operand 0']
    #allocation5 [shape = 's32[2]{0}', space=sflag, size = 0x8, scoped, tag = 'scoped memory for tpu_custom_call.1']
    #allocation6 [shape = 's32[2]{0}', space=sflag, size = 0x8, scoped, tag = 'scoped memory for tpu_custom_call.1']
    #allocation7 [shape = 'u8[16384]{0}', space=vmem, size = 0x4000, scoped, tag = 'input window, operand 1']
    #allocation8 [shape = 's32[2]{0}', space=sflag, size = 0x8, scoped, tag = 'scoped memory for tpu_custom_call.1']
    #allocation9 [shape = 'u8[262144]{0}', space=vmem, size = 0x40000, scoped, tag = 'input window, operand 2']
    #allocation10 [shape = 'u8[131072]{0}', space=vmem, size = 0x20000, scoped, tag = 'input window, operand 4, single buffered']
    #allocation11 [shape = 's32[1]{0}', space=sflag, size = 0x4, scoped, tag = 'scoped memory for tpu_custom_call.1']
    #allocation12 [shape = 'u8[131072]{0}', space=vmem, size = 0x20000, scoped, tag = 'input window, operand 5, single buffered']
    #allocation13 [shape = 'u8[8192]{0}', space=vmem, size = 0x2000, scoped, tag = 'input window, operand 8']
    #allocation14 [shape = 's32[2]{0}', space=sflag, size = 0x8, scoped, tag = 'scoped memory for tpu_custom_call.1']
    #allocation15 [shape = 'u8[8192]{0}', space=vmem, size = 0x2000, scoped, tag = 'output window, operand 0']
    #allocation16 [shape = 'u8[8192]{0}', space=vmem, size = 0x2000, scoped, tag = 'output window, operand 1']
    #allocation17 [shape = 's32[2]{0}', space=sflag, size = 0x8, scoped, tag = 'scoped memory for tpu_custom_call.1']
    #allocation18 [shape = 'u8[8192]{0}', space=vmem, size = 0x2000, scoped, tag = 'output window, operand 2']
    %18 = vsyncpa [#allocation5], 0
    %s19 = scalar_lea.sflag [#allocation5], 1
    %20 = vsyncpa %s19, 0
    %21 = vsyncpa [#allocation8], 0
    %s22 = scalar_lea.sflag [#allocation8], 1
    %23 = vsyncpa %s22, 0
    %24 = vsyncpa [#allocation11], 0
    %25 = vsyncpa [#allocation14], 0
    %s26 = scalar_lea.sflag [#allocation14], 1
    %27 = vsyncpa %s26, 0
    %28 = vsyncpa [#allocation6], 0
    %s29 = scalar_lea.sflag [#allocation6], 1
    %30 = vsyncpa %s29, 0
    %31 = vsyncpa [#allocation17], 0
    %s32 = scalar_lea.sflag [#allocation17], 1
    %33 = vsyncpa %s32, 0
    loop: start=0, step=1, limit=6
    $region2: #{tpu_custom_call.1} parent=1 // loop_pre_header
      _
    $region3: #{tpu_custom_call.1} parent=1 // loop_header
      %s35 = sphi 0, %s39
      %p36 = scmp.ge.s32.totalorder %s35, 6
      %s42 = sphi 0, %s54
      %s43 = sphi 0, %s50
      %s44 = sphi 0, %s42
      %s45 = sphi 0, %s43
      %s46 = sphi 0, %s44
      %s47 = sphi 0, %s45
      %s59 = sphi 0, %s61
      %s62 = sphi 0, %s59
      %s63 = sphi 0, %s62
      %s79 = sphi 0, %s63
      %s87 = sphi 0, %s89
      %s90 = sphi 0, %s87
      %s91 = sphi 0, %s90
      %s107 = sphi 0, %s91
      %s113 = sphi 0, %s115
      %s116 = sphi 0, %s113
      %s117 = sphi 0, %s116
      %s133 = sphi 0, %s117
      %s137 = sphi 0, %s137
      %s139 = sphi 0, %s137
      %s140 = sphi 0, %s139
      %s154 = sphi 0, %s140
      %s158 = sphi 0, %s158
      %s160 = sphi 0, %s158
      %s161 = sphi 0, %s160
      %s175 = sphi 0, %s161
      %s179 = sphi 0, %s179
      %s181 = sphi 0, %s179
      %s182 = sphi 0, %s181
      %s196 = sphi 0, %s182
      %s200 = sphi 0, %s200
      %s202 = sphi 0, %s200
      %s203 = sphi 0, %s202
      %s217 = sphi 0, %s203
      %s221 = sphi 0, %s221
      %s223 = sphi 0, %s221
      %s224 = sphi 0, %s223
      %s238 = sphi 0, %s224
      %s244 = sphi 0, %s246
      %s247 = sphi 0, %s244
      %s248 = sphi 0, %s247
      %s264 = sphi 0, %s248
      %s270 = sphi 0, %s272
      %s273 = sphi 0, %s270
      %s274 = sphi 0, %s273
      %s290 = sphi 0, %s274
      %s296 = sphi 0, %s298
      %s299 = sphi 0, %s296
      %s300 = sphi 0, %s299
      %s316 = sphi 0, %s300
      %s322 = sphi 0, %s324
      %s325 = sphi 0, %s322
      %s326 = sphi 0, %s325
      %s342 = sphi 0, %s326
      %s348 = sphi 0, %s350
      %s351 = sphi 0, %s348
      %s352 = sphi 0, %s351
      %s368 = sphi 0, %s352
    $region4: #{tpu_custom_call.1} parent=1 // loop_header_branch
      %38 = sbr.rel (%p36) target = $region8
    $region5: #{tpu_custom_call.1} parent=1 // loop_body
      %s40 = ssub.s32 %s35, 1
      %s41 = ssub.s32 %s35, 2
      %s48 = sadd.s32 1, %s43
      %p49 = scmp.ge.s32.totalorder %s48, 2
      %s50 = scalar_select %p49, 0, %s48
      %s51 = sadd.s32 1, %s42
      %s52 = scalar_select %p49, %s51, %s42
      %p53 = scmp.ge.s32.totalorder %s52, 2
      %s54 = scalar_select %p53, 0, %s52
      %s55 = ssub.s32 %s42, %s54
      %s56 = ssub.s32 %s43, %s50
      %s57 = sor.u32 %s55, %s56
      %p58 = scmp.eq.s32.totalorder %s57, 0
      %s60 = sadd.s32 %s59, 1
      %s61 = scalar_select %p58, %s59, %s60
      %p64 = pneg %p58
      %p65 = scmp.eq.s32.totalorder %s35, 3
      %p66 = por %p64, %p65
      %p67 = scmp.ne.s32.totalorder %s59, %s62
      %p68 = scmp.eq.s32.totalorder %s35, 0
      %p69 = por %p67, %p68
      %p70 = scmp.ne.s32.totalorder %s59, %s62
      %p71 = scmp.eq.s32.totalorder %s40, 3
      %p72 = por %p70, %p71
      %p73 = scmp.ne.s32.totalorder %s62, %s63
      %p74 = scmp.eq.s32.totalorder %s40, 0
      %p75 = por %p73, %p74
      %p76 = scmp.ne.s32.totalorder %s62, %s63
      %p77 = scmp.eq.s32.totalorder %s41, 3
      %p78 = por %p76, %p77
      %p80 = scmp.ne.s32.totalorder %s63, %s79
      %p81 = scmp.eq.s32.totalorder %s41, 0
      %p82 = por %p80, %p81
      %s83 = ssub.s32 %s42, %s54
      %s84 = ssub.s32 %s43, %s50
      %s85 = sor.u32 %s83, %s84
      %p86 = scmp.eq.s32.totalorder %s85, 0
      %s88 = sadd.s32 %s87, 1
      %s89 = scalar_select %p86, %s87, %s88
      %p92 = pneg %p86
      %p93 = scmp.eq.s32.totalorder %s35, 3
      %p94 = por %p92, %p93
      %p95 = scmp.ne.s32.totalorder %s87, %s90
      %p96 = scmp.eq.s32.totalorder %s35, 0
      %p97 = por %p95, %p96
      %p98 = scmp.ne.s32.totalorder %s87, %s90
      %p99 = scmp.eq.s32.totalorder %s40, 3
      %p100 = por %p98, %p99
      %p101 = scmp.ne.s32.totalorder %s90, %s91
      %p102 = scmp.eq.s32.totalorder %s40, 0
      %p103 = por %p101, %p102
      %p104 = scmp.ne.s32.totalorder %s90, %s91
      %p105 = scmp.eq.s32.totalorder %s41, 3
      %p106 = por %p104, %p105
      %p108 = scmp.ne.s32.totalorder %s91, %s107
      %p109 = scmp.eq.s32.totalorder %s41, 0
      %p110 = por %p108, %p109
      %s111 = ssub.s32 %s43, %s50
      %p112 = scmp.eq.s32.totalorder %s111, 0
      %s114 = sadd.s32 %s113, 1
      %s115 = scalar_select %p112, %s113, %s114
      %p118 = pneg %p112
      %p119 = scmp.eq.s32.totalorder %s35, 3
      %p120 = por %p118, %p119
      %p121 = scmp.ne.s32.totalorder %s113, %s116
      %p122 = scmp.eq.s32.totalorder %s35, 0
      %p123 = por %p121, %p122
      %p124 = scmp.ne.s32.totalorder %s113, %s116
      %p125 = scmp.eq.s32.totalorder %s40, 3
      %p126 = por %p124, %p125
      %p127 = scmp.ne.s32.totalorder %s116, %s117
      %p128 = scmp.eq.s32.totalorder %s40, 0
      %p129 = por %p127, %p128
      %p130 = scmp.ne.s32.totalorder %s116, %s117
      %p131 = scmp.eq.s32.totalorder %s41, 3
      %p132 = por %p130, %p131
      %p134 = scmp.ne.s32.totalorder %s117, %s133
      %p135 = scmp.eq.s32.totalorder %s41, 0
      %p136 = por %p134, %p135
      %s138 = sadd.s32 %s137, 1
      %p141 = scmp.eq.s32.totalorder %s35, 3
      %p142 = scmp.ne.s32.totalorder %s137, %s139
      %p143 = scmp.eq.s32.totalorder %s35, 0
      %p144 = por %p142, %p143
      %p145 = scmp.ne.s32.totalorder %s137, %s139
      %p146 = scmp.eq.s32.totalorder %s40, 3
      %p147 = por %p145, %p146
      %p148 = scmp.ne.s32.totalorder %s139, %s140
      %p149 = scmp.eq.s32.totalorder %s40, 0
      %p150 = por %p148, %p149
      %p151 = scmp.ne.s32.totalorder %s139, %s140
      %p152 = scmp.eq.s32.totalorder %s41, 3
      %p153 = por %p151, %p152
      %p155 = scmp.ne.s32.totalorder %s140, %s154
      %p156 = scmp.eq.s32.totalorder %s41, 0
      %p157 = por %p155, %p156
      %s159 = sadd.s32 %s158, 1
      %p162 = scmp.eq.s32.totalorder %s35, 3
      %p163 = scmp.ne.s32.totalorder %s158, %s160
      %p164 = scmp.eq.s32.totalorder %s35, 0
      %p165 = por %p163, %p164
      %p166 = scmp.ne.s32.totalorder %s158, %s160
      %p167 = scmp.eq.s32.totalorder %s40, 3
      %p168 = por %p166, %p167
      %p169 = scmp.ne.s32.totalorder %s160, %s161
      %p170 = scmp.eq.s32.totalorder %s40, 0
      %p171 = por %p169, %p170
      %p172 = scmp.ne.s32.totalorder %s160, %s161
      %p173 = scmp.eq.s32.totalorder %s41, 3
      %p174 = por %p172, %p173
      %p176 = scmp.ne.s32.totalorder %s161, %s175
      %p177 = scmp.eq.s32.totalorder %s41, 0
      %p178 = por %p176, %p177
      %s180 = sadd.s32 %s179, 1
      %p183 = scmp.eq.s32.totalorder %s35, 3
      %p184 = scmp.ne.s32.totalorder %s179, %s181
      %p185 = scmp.eq.s32.totalorder %s35, 0
      %p186 = por %p184, %p185
      %p187 = scmp.ne.s32.totalorder %s179, %s181
      %p188 = scmp.eq.s32.totalorder %s40, 3
      %p189 = por %p187, %p188
      %p190 = scmp.ne.s32.totalorder %s181, %s182
      %p191 = scmp.eq.s32.totalorder %s40, 0
      %p192 = por %p190, %p191
      %p193 = scmp.ne.s32.totalorder %s181, %s182
      %p194 = scmp.eq.s32.totalorder %s41, 3
      %p195 = por %p193, %p194
      %p197 = scmp.ne.s32.totalorder %s182, %s196
      %p198 = scmp.eq.s32.totalorder %s41, 0
      %p199 = por %p197, %p198
      %s201 = sadd.s32 %s200, 1
      %p204 = scmp.eq.s32.totalorder %s35, 3
      %p205 = scmp.ne.s32.totalorder %s200, %s202
      %p206 = scmp.eq.s32.totalorder %s35, 0
      %p207 = por %p205, %p206
      %p208 = scmp.ne.s32.totalorder %s200, %s202
      %p209 = scmp.eq.s32.totalorder %s40, 3
      %p210 = por %p208, %p209
      %p211 = scmp.ne.s32.totalorder %s202, %s203
      %p212 = scmp.eq.s32.totalorder %s40, 0
      %p213 = por %p211, %p212
      %p214 = scmp.ne.s32.totalorder %s202, %s203
      %p215 = scmp.eq.s32.totalorder %s41, 3
      %p216 = por %p214, %p215
      %p218 = scmp.ne.s32.totalorder %s203, %s217
      %p219 = scmp.eq.s32.totalorder %s41, 0
      %p220 = por %p218, %p219
      %s222 = sadd.s32 %s221, 1
      %p225 = scmp.eq.s32.totalorder %s35, 3
      %p226 = scmp.ne.s32.totalorder %s221, %s223
      %p227 = scmp.eq.s32.totalorder %s35, 0
      %p228 = por %p226, %p227
      %p229 = scmp.ne.s32.totalorder %s221, %s223
      %p230 = scmp.eq.s32.totalorder %s40, 3
      %p231 = por %p229, %p230
      %p232 = scmp.ne.s32.totalorder %s223, %s224
      %p233 = scmp.eq.s32.totalorder %s40, 0
      %p234 = por %p232, %p233
      %p235 = scmp.ne.s32.totalorder %s223, %s224
      %p236 = scmp.eq.s32.totalorder %s41, 3
      %p237 = por %p235, %p236
      %p239 = scmp.ne.s32.totalorder %s224, %s238
      %p240 = scmp.eq.s32.totalorder %s41, 0
      %p241 = por %p239, %p240
      %s242 = ssub.s32 %s42, %s54
      %p243 = scmp.eq.s32.totalorder %s242, 0
      %s245 = sadd.s32 %s244, 1
      %s246 = scalar_select %p243, %s244, %s245
      %p249 = pneg %p243
      %p250 = scmp.eq.s32.totalorder %s35, 3
      %p251 = por %p249, %p250
      %p252 = scmp.ne.s32.totalorder %s244, %s247
      %p253 = scmp.eq.s32.totalorder %s35, 0
      %p254 = por %p252, %p253
      %p255 = scmp.ne.s32.totalorder %s244, %s247
      %p256 = scmp.eq.s32.totalorder %s40, 3
      %p257 = por %p255, %p256
      %p258 = scmp.ne.s32.totalorder %s247, %s248
      %p259 = scmp.eq.s32.totalorder %s40, 0
      %p260 = por %p258, %p259
      %p261 = scmp.ne.s32.totalorder %s247, %s248
      %p262 = scmp.eq.s32.totalorder %s41, 3
      %p263 = por %p261, %p262
      %p265 = scmp.ne.s32.totalorder %s248, %s264
      %p266 = scmp.eq.s32.totalorder %s41, 0
      %p267 = por %p265, %p266
      %s268 = ssub.s32 %s42, %s54
      %p269 = scmp.eq.s32.totalorder %s268, 0
      %s271 = sadd.s32 %s270, 1
      %s272 = scalar_select %p269, %s270, %s271
      %p275 = pneg %p269
      %p276 = scmp.eq.s32.totalorder %s35, 3
      %p277 = por %p275, %p276
      %p278 = scmp.ne.s32.totalorder %s270, %s273
      %p279 = scmp.eq.s32.totalorder %s35, 0
      %p280 = por %p278, %p279
      %p281 = scmp.ne.s32.totalorder %s270, %s273
      %p282 = scmp.eq.s32.totalorder %s40, 3
      %p283 = por %p281, %p282
      %p284 = scmp.ne.s32.totalorder %s273, %s274
      %p285 = scmp.eq.s32.totalorder %s40, 0
      %p286 = por %p284, %p285
      %p287 = scmp.ne.s32.totalorder %s273, %s274
      %p288 = scmp.eq.s32.totalorder %s41, 3
      %p289 = por %p287, %p288
      %p291 = scmp.ne.s32.totalorder %s274, %s290
      %p292 = scmp.eq.s32.totalorder %s41, 0
      %p293 = por %p291, %p292
      %s294 = ssub.s32 %s42, %s54
      %p295 = scmp.eq.s32.totalorder %s294, 0
      %s297 = sadd.s32 %s296, 1
      %s298 = scalar_select %p295, %s296, %s297
      %p301 = pneg %p295
      %p302 = scmp.eq.s32.totalorder %s35, 3
      %p303 = por %p301, %p302
      %p304 = scmp.ne.s32.totalorder %s296, %s299
      %p305 = scmp.eq.s32.totalorder %s35, 0
      %p306 = por %p304, %p305
      %p307 = scmp.ne.s32.totalorder %s296, %s299
      %p308 = scmp.eq.s32.totalorder %s40, 3
      %p309 = por %p307, %p308
      %p310 = scmp.ne.s32.totalorder %s299, %s300
      %p311 = scmp.eq.s32.totalorder %s40, 0
      %p312 = por %p310, %p311
      %p313 = scmp.ne.s32.totalorder %s299, %s300
      %p314 = scmp.eq.s32.totalorder %s41, 3
      %p315 = por %p313, %p314
      %p317 = scmp.ne.s32.totalorder %s300, %s316
      %p318 = scmp.eq.s32.totalorder %s41, 0
      %p319 = por %p317, %p318
      %s320 = ssub.s32 %s42, %s54
      %p321 = scmp.eq.s32.totalorder %s320, 0
      %s323 = sadd.s32 %s322, 1
      %s324 = scalar_select %p321, %s322, %s323
      %p327 = pneg %p321
      %p328 = scmp.eq.s32.totalorder %s35, 3
      %p329 = por %p327, %p328
      %p330 = scmp.ne.s32.totalorder %s322, %s325
      %p331 = scmp.eq.s32.totalorder %s35, 0
      %p332 = por %p330, %p331
      %p333 = scmp.ne.s32.totalorder %s322, %s325
      %p334 = scmp.eq.s32.totalorder %s40, 3
      %p335 = por %p333, %p334
      %p336 = scmp.ne.s32.totalorder %s325, %s326
      %p337 = scmp.eq.s32.totalorder %s40, 0
      %p338 = por %p336, %p337
      %p339 = scmp.ne.s32.totalorder %s325, %s326
      %p340 = scmp.eq.s32.totalorder %s41, 3
      %p341 = por %p339, %p340
      %p343 = scmp.ne.s32.totalorder %s326, %s342
      %p344 = scmp.eq.s32.totalorder %s41, 0
      %p345 = por %p343, %p344
      %s346 = ssub.s32 %s42, %s54
      %p347 = scmp.eq.s32.totalorder %s346, 0
      %s349 = sadd.s32 %s348, 1
      %s350 = scalar_select %p347, %s348, %s349
      %p353 = pneg %p347
      %p354 = scmp.eq.s32.totalorder %s35, 3
      %p355 = por %p353, %p354
      %p356 = scmp.ne.s32.totalorder %s348, %s351
      %p357 = scmp.eq.s32.totalorder %s35, 0
      %p358 = por %p356, %p357
      %p359 = scmp.ne.s32.totalorder %s348, %s351
      %p360 = scmp.eq.s32.totalorder %s40, 3
      %p361 = por %p359, %p360
      %p362 = scmp.ne.s32.totalorder %s351, %s352
      %p363 = scmp.eq.s32.totalorder %s40, 0
      %p364 = por %p362, %p363
      %p365 = scmp.ne.s32.totalorder %s351, %s352
      %p366 = scmp.eq.s32.totalorder %s41, 3
      %p367 = por %p365, %p366
      %p369 = scmp.ne.s32.totalorder %s352, %s368
      %p370 = scmp.eq.s32.totalorder %s41, 0
      %p371 = por %p369, %p370
      %p372 = scmp.le.s32.totalorder 1, %s35
      %p373 = scmp.lt.s32.totalorder %s35, 5
      %p374 = pnand %p372, %p373
      %p375 = pneg %p374
      // Predicated region
      $region9: #{tpu_custom_call.1} parent=5 // pred_check
        _
      $region10: #{tpu_custom_call.1} parent=5 // pred_check_branch
        %377 = sbr.rel (%p374) target = $region12
      $region11: #{tpu_custom_call.1} parent=5 // pred_region
        %s378 = ssub.s32 %s35, 1
        // Predicated region
        $region13: #{tpu_custom_call.1} parent=11 // pred_check
          %p379 = pneg %p150
        $region14: #{tpu_custom_call.1} parent=11 // pred_check_branch
          %381 = sbr.rel (%p379) target = $region16
        $region15: #{tpu_custom_call.1} parent=11 // pred_region
          _
        $region16: #{tpu_custom_call.1} parent=11 // pred_fallthru
          _
        // Predicated region
        $region17: #{tpu_custom_call.1} parent=11 // pred_check
          %p382 = pneg %p171
        $region18: #{tpu_custom_call.1} parent=11 // pred_check_branch
          %384 = sbr.rel (%p382) target = $region20
        $region19: #{tpu_custom_call.1} parent=11 // pred_region
          %386 = vsyncadd [#allocation11], 0
          %s387 = sshll.u32 %s4, 4
          %s388 = int_to_ptr.hbm [resolvable:$true] %s387
          %s389 = sshll.u32 [#allocation10], 4
          %s390 = int_to_ptr.vmem [resolvable:$true] %s389
          %395 = dma.hbm_to_vmem [thread:$0]  %s388, 4096, %s390, [#allocation11], 128, 128, 8
        $region20: #{tpu_custom_call.1} parent=11 // pred_fallthru
          _
        // Predicated region
        $region21: #{tpu_custom_call.1} parent=11 // pred_check
          %p396 = pneg %p192
        $region22: #{tpu_custom_call.1} parent=11 // pred_check_branch
          %398 = sbr.rel (%p396) target = $region24
        $region23: #{tpu_custom_call.1} parent=11 // pred_region
          %400 = vsyncadd [#allocation11], 0
          %s401 = sshll.u32 %s5, 4
          %s402 = int_to_ptr.hbm [resolvable:$true] %s401
          %s403 = sshll.u32 [#allocation12], 4
          %s404 = int_to_ptr.vmem [resolvable:$true] %s403
          %409 = dma.hbm_to_vmem [thread:$0]  %s402, 4096, %s404, [#allocation11], 128, 128, 8
        $region24: #{tpu_custom_call.1} parent=11 // pred_fallthru
          _
        // Predicated region
        $region25: #{tpu_custom_call.1} parent=11 // pred_check
          %p410 = pneg %p213
        $region26: #{tpu_custom_call.1} parent=11 // pred_check_branch
          %412 = sbr.rel (%p410) target = $region28
        $region27: #{tpu_custom_call.1} parent=11 // pred_region
          _
        $region28: #{tpu_custom_call.1} parent=11 // pred_fallthru
          _
        // Predicated region
        $region29: #{tpu_custom_call.1} parent=11 // pred_check
          %p413 = pneg %p234
        $region30: #{tpu_custom_call.1} parent=11 // pred_check_branch
          %415 = sbr.rel (%p413) target = $region32
        $region31: #{tpu_custom_call.1} parent=11 // pred_region
          _
        $region32: #{tpu_custom_call.1} parent=11 // pred_fallthru
          _
      $region12: #{tpu_custom_call.1} parent=5 // pred_fallthru
        _
      %p416 = scmp.lt.s32.totalorder %s35, 4
      // Predicated region
      $region33: #{tpu_custom_call.1} parent=5 // pred_check
        %p417 = pneg %p416
      $region34: #{tpu_custom_call.1} parent=5 // pred_check_branch
        %419 = sbr.rel (%p417) target = $region36
      $region35: #{tpu_custom_call.1} parent=5 // pred_region
        // Predicated region
        $region37: #{tpu_custom_call.1} parent=35 // pred_check
          %p420 = pneg %p69
        $region38: #{tpu_custom_call.1} parent=35 // pred_check_branch
          %422 = sbr.rel (%p420) target = $region40
        $region39: #{tpu_custom_call.1} parent=35 // pred_region
          %s423 = sand.u32 %s59, 1
          %s424 = scalar_lea.sflag [#allocation5], %s423
          %s425 = sand.u32 %s59, 1
          %s426 = smul.addr %s425, 16
          %s427 = scalar_lea.vmem [#allocation4], %s426
          %s428 = smul.u32 2, %s43
          %430 = vsyncadd %s424, 0
          %s431 = smul.addr %s42, 4
          %s432 = sadd.s32 %s428, %s431
          %s433 = smul.addr %s432, 8
          %s434 = scalar_lea.hbm %s0, %s433
          %s436 = sshll.u32 %s434, 4
          %s437 = int_to_ptr.hbm [resolvable:$true] %s436
          %s438 = sshll.u32 %s427, 4
          %s439 = int_to_ptr.vmem [resolvable:$true] %s438
          %441 = dma.hbm_to_vmem [thread:$0]  %s437, 256, %s439, %s424
        $region40: #{tpu_custom_call.1} parent=35 // pred_fallthru
          _
        // Predicated region
        $region41: #{tpu_custom_call.1} parent=35 // pred_check
          %p442 = pneg %p97
        $region42: #{tpu_custom_call.1} parent=35 // pred_check_branch
          %444 = sbr.rel (%p442) target = $region44
        $region43: #{tpu_custom_call.1} parent=35 // pred_region
          %s445 = sand.u32 %s35, 1
          %s446 = scalar_lea.sflag [#allocation8], %s445
          %s447 = sand.u32 %s87, 1
          %s448 = smul.addr %s447, 16
          %s449 = scalar_lea.vmem [#allocation7], %s448
          %s450 = smul.u32 2, %s43
          %452 = vsyncadd %s446, 0
          %s453 = smul.addr %s42, 4
          %s454 = sadd.s32 %s450, %s453
          %s455 = smul.addr %s454, 8
          %s456 = scalar_lea.hbm %s1, %s455
          %s458 = sshll.u32 %s456, 4
          %s459 = int_to_ptr.hbm [resolvable:$true] %s458
          %s460 = sshll.u32 %s449, 4
          %s461 = int_to_ptr.vmem [resolvable:$true] %s460
          %463 = dma.hbm_to_vmem [thread:$0]  %s459, 256, %s461, %s446
        $region44: #{tpu_custom_call.1} parent=35 // pred_fallthru
          _
        // Predicated region
        $region45: #{tpu_custom_call.1} parent=35 // pred_check
          %p464 = pneg %p123
        $region46: #{tpu_custom_call.1} parent=35 // pred_check_branch
          %466 = sbr.rel (%p464) target = $region48
        $region47: #{tpu_custom_call.1} parent=35 // pred_region
          %s467 = sand.u32 %s35, 1
          %s468 = scalar_lea.sflag [#allocation8], %s467
          %s469 = sand.u32 %s113, 1
          %s470 = smul.addr %s469, 256
          %s471 = scalar_lea.vmem [#allocation9], %s470
          %s472 = smul.u32 32, %s43
          %474 = vsyncadd %s468, 0
          %s475 = smul.addr %s472, 2
          %s476 = smul.addr %s475, 4
          %s477 = scalar_lea.hbm %s2, %s476
          %s478 = sshll.u32 %s477, 4
          %s479 = int_to_ptr.hbm [resolvable:$true] %s478
          %s480 = sshll.u32 %s471, 4
          %s481 = int_to_ptr.vmem [resolvable:$true] %s480
          %486 = dma.hbm_to_vmem [thread:$0]  %s479, 4096, %s481, %s468, 128, 128, 8
        $region48: #{tpu_custom_call.1} parent=35 // pred_fallthru
          _
        // Predicated region
        $region49: #{tpu_custom_call.1} parent=35 // pred_check
          %p487 = pneg %p254
        $region50: #{tpu_custom_call.1} parent=35 // pred_check_branch
          %489 = sbr.rel (%p487) target = $region52
        $region51: #{tpu_custom_call.1} parent=35 // pred_region
          %s490 = sand.u32 %s244, 1
          %s491 = scalar_lea.sflag [#allocation14], %s490
          %s492 = sand.u32 %s244, 1
          %s493 = smul.addr %s492, 8
          %s494 = scalar_lea.vmem [#allocation13], %s493
          %496 = vsyncadd %s491, 0
          %s497 = smul.addr %s42, 8
          %s498 = scalar_lea.hbm %s8, %s497
          %s500 = sshll.u32 %s498, 4
          %s501 = int_to_ptr.hbm [resolvable:$true] %s500
          %s502 = sshll.u32 %s494, 4
          %s503 = int_to_ptr.vmem [resolvable:$true] %s502
          %505 = dma.hbm_to_vmem [thread:$0]  %s501, 128, %s503, %s491
        $region52: #{tpu_custom_call.1} parent=35 // pred_fallthru
          _
      $region36: #{tpu_custom_call.1} parent=5 // pred_fallthru
        _
      %p506 = scmp.le.s32.totalorder 1, %s35
      %p507 = scmp.lt.s32.totalorder %s35, 5
      %p508 = pnand %p506, %p507
      %p509 = pneg %p508
      // Predicated region
      $region53: #{tpu_custom_call.1} parent=5 // pred_check
        _
      $region54: #{tpu_custom_call.1} parent=5 // pred_check_branch
        %511 = sbr.rel (%p508) target = $region56
      $region55: #{tpu_custom_call.1} parent=5 // pred_region
        %s512 = ssub.s32 %s35, 1
        %s513 = sand.u32 %s62, 1
        %s514 = scalar_lea.sflag [#allocation5], %s513
        %s515 = sand.u32 %s62, 1
        %s516 = smul.addr %s515, 16
        %s517 = scalar_lea.vmem [#allocation4], %s516
        // Predicated region
        $region57: #{tpu_custom_call.1} parent=55 // pred_check
          %p518 = pneg %p75
        $region58: #{tpu_custom_call.1} parent=55 // pred_check_branch
          %520 = sbr.rel (%p518) target = $region60
        $region59: #{tpu_custom_call.1} parent=55 // pred_region
          %522 = dma.done %s514, 256
        $region60: #{tpu_custom_call.1} parent=55 // pred_fallthru
          _
        %s523 = sand.u32 %s40, 1
        %s524 = scalar_lea.sflag [#allocation8], %s523
        %s525 = sand.u32 %s90, 1
        %s526 = smul.addr %s525, 16
        %s527 = scalar_lea.vmem [#allocation7], %s526
        // Predicated region
        $region61: #{tpu_custom_call.1} parent=55 // pred_check
          %p528 = pneg %p103
        $region62: #{tpu_custom_call.1} parent=55 // pred_check_branch
          %530 = sbr.rel (%p528) target = $region64
        $region63: #{tpu_custom_call.1} parent=55 // pred_region
          %532 = dma.done %s524, 256
        $region64: #{tpu_custom_call.1} parent=55 // pred_fallthru
          _
        %s533 = sand.u32 %s40, 1
        %s534 = scalar_lea.sflag [#allocation8], %s533
        %s535 = sand.u32 %s116, 1
        %s536 = smul.addr %s535, 256
        %s537 = scalar_lea.vmem [#allocation9], %s536
        // Predicated region
        $region65: #{tpu_custom_call.1} parent=55 // pred_check
          %p538 = pneg %p129
        $region66: #{tpu_custom_call.1} parent=55 // pred_check_branch
          %540 = sbr.rel (%p538) target = $region68
        $region67: #{tpu_custom_call.1} parent=55 // pred_region
          %542 = dma.done %s534, 4096
        $region68: #{tpu_custom_call.1} parent=55 // pred_fallthru
          _
        // Predicated region
        $region69: #{tpu_custom_call.1} parent=55 // pred_check
          %p543 = pneg %p171
        $region70: #{tpu_custom_call.1} parent=55 // pred_check_branch
          %545 = sbr.rel (%p543) target = $region72
        $region71: #{tpu_custom_call.1} parent=55 // pred_region
          %547 = dma.done [#allocation11], 4096
        $region72: #{tpu_custom_call.1} parent=55 // pred_fallthru
          _
        // Predicated region
        $region73: #{tpu_custom_call.1} parent=55 // pred_check
          %p548 = pneg %p192
        $region74: #{tpu_custom_call.1} parent=55 // pred_check_branch
          %550 = sbr.rel (%p548) target = $region76
        $region75: #{tpu_custom_call.1} parent=55 // pred_region
          %552 = dma.done [#allocation11], 4096
        $region76: #{tpu_custom_call.1} parent=55 // pred_fallthru
          _
        %s553 = sand.u32 %s247, 1
        %s554 = scalar_lea.sflag [#allocation14], %s553
        %s555 = sand.u32 %s247, 1
        %s556 = smul.addr %s555, 8
        %s557 = scalar_lea.vmem [#allocation13], %s556
        // Predicated region
        $region77: #{tpu_custom_call.1} parent=55 // pred_check
          %p558 = pneg %p260
        $region78: #{tpu_custom_call.1} parent=55 // pred_check_branch
          %560 = sbr.rel (%p558) target = $region80
        $region79: #{tpu_custom_call.1} parent=55 // pred_region
          %562 = dma.done %s554, 128
        $region80: #{tpu_custom_call.1} parent=55 // pred_fallthru
          _
        %s563 = sand.u32 %s62, 1
        %s564 = scalar_lea.sflag [#allocation5], %s563
        %s565 = sand.u32 %s62, 1
        %s566 = smul.addr %s565, 16
        %s567 = scalar_lea.vmem [#allocation4], %s566
        %p568 = pneg %p75
        %p569 = pneg %p72
        %s570 = sand.u32 %s40, 1
        %s571 = scalar_lea.sflag [#allocation8], %s570
        %s572 = sand.u32 %s90, 1
        %s573 = smul.addr %s572, 16
        %s574 = scalar_lea.vmem [#allocation7], %s573
        %p575 = pneg %p103
        %p576 = pneg %p100
        %s577 = sand.u32 %s40, 1
        %s578 = scalar_lea.sflag [#allocation8], %s577
        %s579 = sand.u32 %s116, 1
        %s580 = smul.addr %s579, 256
        %s581 = scalar_lea.vmem [#allocation9], %s580
        %p582 = pneg %p129
        %p583 = pneg %p126
        %p584 = pneg %p150
        %p585 = pneg %p147
        %p586 = pneg %p171
        %p587 = pneg %p168
        %p588 = pneg %p192
        %p589 = pneg %p189
        %p590 = pneg %p213
        %p591 = pneg %p210
        %p592 = pneg %p234
        %p593 = pneg %p231
        %s594 = sand.u32 %s247, 1
        %s595 = scalar_lea.sflag [#allocation14], %s594
        %s596 = sand.u32 %s247, 1
        %s597 = smul.addr %s596, 8
        %s598 = scalar_lea.vmem [#allocation13], %s597
        %p599 = pneg %p260
        %p600 = pneg %p257
        %p601 = pneg %p286
        %p602 = pneg %p283
        %s603 = sand.u32 %s273, 1
        %s604 = scalar_lea.sflag [#allocation6], %s603
        %s605 = sand.u32 %s273, 1
        %s606 = smul.addr %s605, 8
        %s607 = scalar_lea.vmem [#allocation15], %s606
        %p608 = pneg %p312
        %p609 = pneg %p309
        %s610 = sand.u32 %s40, 1
        %s611 = scalar_lea.sflag [#allocation17], %s610
        %s612 = sand.u32 %s299, 1
        %s613 = smul.addr %s612, 8
        %s614 = scalar_lea.vmem [#allocation16], %s613
        %p615 = pneg %p338
        %p616 = pneg %p335
        %s617 = sand.u32 %s40, 1
        %s618 = scalar_lea.sflag [#allocation17], %s617
        %s619 = sand.u32 %s325, 1
        %s620 = smul.addr %s619, 8
        %s621 = scalar_lea.vmem [#allocation18], %s620
        %p622 = pneg %p364
        %p623 = pneg %p361
        %p624 = scmp.lt.s32.totalorder %s44, 1
        %s625 = scalar_select %p624, %s44, 1
        %s626 = smul.addr %s625, 8
        %s627 = scalar_lea.vmem %s12, %s626
        %s628 = smul.u32 2, %s45
        %s629 = smul.u32 2, %s45
        %s630 = smul.u32 32, %s45
        %p631 = scmp.lt.s32.totalorder %s44, 1
        %s632 = scalar_select %p631, %s44, 1
        %s633 = smul.addr %s632, 8
        %s634 = scalar_lea.vmem %s12, %s633
        %p635 = scmp.eq.s32.totalorder %s45, 0
        // Predicated region
        $region81: #{tpu_custom_call.1} parent=55 // pred_check
          %p636 = pneg %p635
        $region82: #{tpu_custom_call.1} parent=55 // pred_check_branch
          %638 = sbr.rel (%p636) target = $region84
        $region83: #{tpu_custom_call.1} parent=55 // pred_region
          %639 = vst [vmem:[#allocation2] sm:$0xff] 0.0
          %640 = vst [vmem:[#allocation2 + $0x8] sm:$0xff] 0.0
          %vm641 = vcmask 7168
          %642 = vst.msk [vmem:[#allocation3] sm:$0xff] %vm641, 0.0
        $region84: #{tpu_custom_call.1} parent=55 // pred_fallthru
          _
        %v643 = vld [vmem:[%s517] sm:$0xff]
        %v644 = vld [vmem:[%s517 + $0x8] sm:$0xff]
        %v645 = vld [vmem:[#allocation3] sm:$0xff]
        %v646 = vmul.f32 %v643, %v643
        %v647 = vmul.f32 %v644, %v644
        %v648 = vadd.f32 %v646, %v647
        %649 = vadd.xlane.f32.xlu0 %v648
        %v650 = vpop.xlane.xlu0 %649
        %v651 = vadd.f32 %v645, %v650
        %vm652 = vcmask 7168
        %653 = vst.msk [vmem:[#allocation3] sm:$0xff] %vm652, %v651
        %v654 = vld [vmem:[%s527] sm:$0xff]
        %v655 = vld [vmem:[%s527 + $0x8] sm:$0xff]
        %v656 = vadd.s32 %v654, 2147483648
        %vm658 = vcmp.ge.s32.totalorder %v656, 0
        %v659 = vadd.s32 %v655, 2147483648
        %vm661 = vcmp.ge.s32.totalorder %v659, 0
        %v662 = vsel %vm658, %v643, 0.0
        %v663 = vsel %vm661, %v644, 0.0
        %v664 = vld [vmem:[#allocation2] sm:$0xff]
        %v665 = vld [vmem:[#allocation2 + $0x8] sm:$0xff]
        %v666 = vpack.c.bf16 %v662, %v662
        %v667 = vpack.c.bf16 %v663, %v663
        %v668 = vld [vmem:[%s537] sm:$0xff]
        %v669 = vld [vmem:[%s537 + $0x8] sm:$0xff]
        %v670 = vld [vmem:[%s537 + $0x10] sm:$0xff]
        %v671 = vld [vmem:[%s537 + $0x18] sm:$0xff]
        %v672 = vld [vmem:[%s537 + $0x20] sm:$0xff]
        %v673 = vld [vmem:[%s537 + $0x28] sm:$0xff]
        %v674 = vld [vmem:[%s537 + $0x30] sm:$0xff]
        %v675 = vld [vmem:[%s537 + $0x38] sm:$0xff]
        %v676 = vld [vmem:[%s537 + $0x40] sm:$0xff]
        %v677 = vld [vmem:[%s537 + $0x48] sm:$0xff]
        %v678 = vld [vmem:[%s537 + $0x50] sm:$0xff]
        %v679 = vld [vmem:[%s537 + $0x58] sm:$0xff]
        %v680 = vld [vmem:[%s537 + $0x60] sm:$0xff]
        %v681 = vld [vmem:[%s537 + $0x68] sm:$0xff]
        %v682 = vld [vmem:[%s537 + $0x70] sm:$0xff]
        %v683 = vld [vmem:[%s537 + $0x78] sm:$0xff]
        %v684 = vld [vmem:[%s537 + $0x80] sm:$0xff]
        %v685 = vld [vmem:[%s537 + $0x88] sm:$0xff]
        %v686 = vld [vmem:[%s537 + $0x90] sm:$0xff]
        %v687 = vld [vmem:[%s537 + $0x98] sm:$0xff]
        %v688 = vld [vmem:[%s537 + $0xa0] sm:$0xff]
        %v689 = vld [vmem:[%s537 + $0xa8] sm:$0xff]
        %v690 = vld [vmem:[%s537 + $0xb0] sm:$0xff]
        %v691 = vld [vmem:[%s537 + $0xb8] sm:$0xff]
        %v692 = vld [vmem:[%s537 + $0xc0] sm:$0xff]
        %v693 = vld [vmem:[%s537 + $0xc8] sm:$0xff]
        %v694 = vld [vmem:[%s537 + $0xd0] sm:$0xff]
        %v695 = vld [vmem:[%s537 + $0xd8] sm:$0xff]
        %v696 = vld [vmem:[%s537 + $0xe0] sm:$0xff]
        %v697 = vld [vmem:[%s537 + $0xe8] sm:$0xff]
        %v698 = vld [vmem:[%s537 + $0xf0] sm:$0xff]
        %v699 = vld [vmem:[%s537 + $0xf8] sm:$0xff]
        %v732 = vunpack.c.l.b16 %v668
        %v733 = vunpack.c.h.b16 %v668
        %v734 = vunpack.c.l.b16 %v669
        %v735 = vunpack.c.h.b16 %v669
        %v736 = vunpack.c.l.b16 %v670
        %v737 = vunpack.c.h.b16 %v670
        %v738 = vunpack.c.l.b16 %v671
        %v739 = vunpack.c.h.b16 %v671
        %v740 = vunpack.c.l.b16 %v672
        %v741 = vunpack.c.h.b16 %v672
        %v742 = vunpack.c.l.b16 %v673
        %v743 = vunpack.c.h.b16 %v673
        %v744 = vunpack.c.l.b16 %v674
        %v745 = vunpack.c.h.b16 %v674
        %v746 = vunpack.c.l.b16 %v675
        %v747 = vunpack.c.h.b16 %v675
        %v748 = vunpack.c.l.b16 %v676
        %v749 = vunpack.c.h.b16 %v676
        %v750 = vunpack.c.l.b16 %v677
        %v751 = vunpack.c.h.b16 %v677
        %v752 = vunpack.c.l.b16 %v678
        %v753 = vunpack.c.h.b16 %v678
        %v754 = vunpack.c.l.b16 %v679
        %v755 = vunpack.c.h.b16 %v679
        %v756 = vunpack.c.l.b16 %v680
        %v757 = vunpack.c.h.b16 %v680
        %v758 = vunpack.c.l.b16 %v681
        %v759 = vunpack.c.h.b16 %v681
        %v760 = vunpack.c.l.b16 %v682
        %v761 = vunpack.c.h.b16 %v682
        %v762 = vunpack.c.l.b16 %v683
        %v763 = vunpack.c.h.b16 %v683
        %v764 = vunpack.c.l.b16 %v684
        %v765 = vunpack.c.h.b16 %v684
        %v766 = vunpack.c.l.b16 %v685
        %v767 = vunpack.c.h.b16 %v685
        %v768 = vunpack.c.l.b16 %v686
        %v769 = vunpack.c.h.b16 %v686
        %v770 = vunpack.c.l.b16 %v687
        %v771 = vunpack.c.h.b16 %v687
        %v772 = vunpack.c.l.b16 %v688
        %v773 = vunpack.c.h.b16 %v688
        %v774 = vunpack.c.l.b16 %v689
        %v775 = vunpack.c.h.b16 %v689
        %v776 = vunpack.c.l.b16 %v690
        %v777 = vunpack.c.h.b16 %v690
        %v778 = vunpack.c.l.b16 %v691
        %v779 = vunpack.c.h.b16 %v691
        %v780 = vunpack.c.l.b16 %v692
        %v781 = vunpack.c.h.b16 %v692
        %v782 = vunpack.c.l.b16 %v693
        %v783 = vunpack.c.h.b16 %v693
        %v784 = vunpack.c.l.b16 %v694
        %v785 = vunpack.c.h.b16 %v694
        %v786 = vunpack.c.l.b16 %v695
        %v787 = vunpack.c.h.b16 %v695
        %v788 = vunpack.c.l.b16 %v696
        %v789 = vunpack.c.h.b16 %v696
        %v790 = vunpack.c.l.b16 %v697
        %v791 = vunpack.c.h.b16 %v697
        %v792 = vunpack.c.l.b16 %v698
        %v793 = vunpack.c.h.b16 %v698
        %v794 = vunpack.c.l.b16 %v699
        %v795 = vunpack.c.h.b16 %v699
        %v796 = vpack.c.b16 %v734, %v732
        %v797 = vpack.c.b16 %v735, %v733
        %v798 = vpack.c.b16 %v738, %v736
        %v799 = vpack.c.b16 %v739, %v737
        %v800 = vpack.c.b16 %v742, %v740
        %v801 = vpack.c.b16 %v743, %v741
        %v802 = vpack.c.b16 %v746, %v744
        %v803 = vpack.c.b16 %v747, %v745
        %v804 = vpack.c.b16 %v750, %v748
        %v805 = vpack.c.b16 %v751, %v749
        %v806 = vpack.c.b16 %v754, %v752
        %v807 = vpack.c.b16 %v755, %v753
        %v808 = vpack.c.b16 %v758, %v756
        %v809 = vpack.c.b16 %v759, %v757
        %v810 = vpack.c.b16 %v762, %v760
        %v811 = vpack.c.b16 %v763, %v761
        %v812 = vpack.c.b16 %v766, %v764
        %v813 = vpack.c.b16 %v767, %v765
        %v814 = vpack.c.b16 %v770, %v768
        %v815 = vpack.c.b16 %v771, %v769
        %v816 = vpack.c.b16 %v774, %v772
        %v817 = vpack.c.b16 %v775, %v773
        %v818 = vpack.c.b16 %v778, %v776
        %v819 = vpack.c.b16 %v779, %v777
        %v820 = vpack.c.b16 %v782, %v780
        %v821 = vpack.c.b16 %v783, %v781
        %v822 = vpack.c.b16 %v786, %v784
        %v823 = vpack.c.b16 %v787, %v785
        %v824 = vpack.c.b16 %v790, %v788
        %v825 = vpack.c.b16 %v791, %v789
        %v826 = vpack.c.b16 %v794, %v792
        %v827 = vpack.c.b16 %v795, %v793
        %860 = vmatpush.bf16.msra.mxu0 %v810
        %861 = vmatpush.bf16.msra.mxu0 %v808
        %862 = vmatpush.bf16.msra.mxu0 %v806
        %863 = vmatpush.bf16.msra.mxu0 %v804
        %864 = vmatpush.bf16.msra.mxu0 %v802
        %865 = vmatpush.bf16.msra.mxu0 %v800
        %866 = vmatpush.bf16.msra.mxu0 %v798
        %867 = vmatpush.bf16.msra.mxu0 %v796
        %868 = vmatmul.bf16.gmra.mxu0 %v666
        %v869 = vpop.f32.mrf.mxu0
        %v870 = vadd.f32 0.0, %v869
        %v871 = vpop.f32.mrf.mxu0
        %872 = vdwg.mxu0
        %873 = vmatpush.bf16.msra.mxu0 %v826
        %874 = vmatpush.bf16.msra.mxu0 %v824
        %875 = vmatpush.bf16.msra.mxu0 %v822
        %876 = vmatpush.bf16.msra.mxu0 %v820
        %877 = vmatpush.bf16.msra.mxu0 %v818
        %878 = vmatpush.bf16.msra.mxu0 %v816
        %879 = vmatpush.bf16.msra.mxu0 %v814
        %880 = vmatpush.bf16.msra.mxu0 %v812
        %881 = vmatmul.bf16.gmra.mxu0 %v667
        %v882 = vpop.f32.mrf.mxu0
        %v883 = vadd.f32 %v870, %v882
        %v884 = vpop.f32.mrf.mxu0
        %885 = vdwg.mxu0
        %886 = vmatpush.bf16.msra.mxu0 %v811
        %887 = vmatpush.bf16.msra.mxu0 %v809
        %888 = vmatpush.bf16.msra.mxu0 %v807
        %889 = vmatpush.bf16.msra.mxu0 %v805
        %890 = vmatpush.bf16.msra.mxu0 %v803
        %891 = vmatpush.bf16.msra.mxu0 %v801
        %892 = vmatpush.bf16.msra.mxu0 %v799
        %893 = vmatpush.bf16.msra.mxu0 %v797
        %894 = vmatmul.bf16.gmra.mxu0 %v666
        %v895 = vpop.f32.mrf.mxu0
        %v896 = vadd.f32 0.0, %v895
        %v897 = vpop.f32.mrf.mxu0
        %898 = vdwg.mxu0
        %899 = vmatpush.bf16.msra.mxu0 %v827
        %900 = vmatpush.bf16.msra.mxu0 %v825
        %901 = vmatpush.bf16.msra.mxu0 %v823
        %902 = vmatpush.bf16.msra.mxu0 %v821
        %903 = vmatpush.bf16.msra.mxu0 %v819
        %904 = vmatpush.bf16.msra.mxu0 %v817
        %905 = vmatpush.bf16.msra.mxu0 %v815
        %906 = vmatpush.bf16.msra.mxu0 %v813
        %907 = vmatmul.bf16.gmra.mxu0 %v667
        %v908 = vpop.f32.mrf.mxu0
        %v909 = vadd.f32 %v896, %v908
        %v910 = vpop.f32.mrf.mxu0
        %911 = vdwg.mxu0
        %v912 = vadd.f32 %v664, %v883
        %v913 = vadd.f32 %v665, %v909
        %914 = vst [vmem:[#allocation2] sm:$0xff] %v912
        %915 = vst [vmem:[#allocation2 + $0x8] sm:$0xff] %v913
        %p916 = scmp.eq.s32.totalorder %s45, 1
        // Predicated region
        $region85: #{tpu_custom_call.1} parent=55 // pred_check
          %p917 = pneg %p916
        $region86: #{tpu_custom_call.1} parent=55 // pred_check_branch
          %919 = sbr.rel (%p917) target = $region88
        $region87: #{tpu_custom_call.1} parent=55 // pred_region
          %v920 = vld [vmem:[#allocation3] sm:$0xff]
          %v921 = vrsqrt.pop %v920
          %v922 = vmul.f32 %v921, %v920
          %v923 = vmul.f32 %v922, %v921
          %v924 = vmul.f32 0.5, %v923
          %v925 = vsub.f32 1.5, %v924
          %v926 = vmul.f32 %v921, %v925
          %v927 = vmul.f32 %v920, %v926
          %vm928 = vcmp.eq.f32.partialorder %v920, inf
          %v929 = vsel %vm928, %v920, %v927
          %vm930 = vcmp.eq.f32.partialorder %v920, 0.0
          %v931 = vand.u32 %v920, 2147483648
          %v932 = vsel %vm930, %v931, %v929
          %v933 = vmax.f32 %v932, 1e-12
          %v934 = vrcp.pop %v933
          %v935 = vmul.f32 %v933, %v934
          %v936 = vsub.f32 1.0, %v935
          %v937 = vmul.f32 %v934, %v936
          %v938 = vadd.f32 %v934, %v937
          %vm939 = vweird.f32 %v933
          %vm940 = vweird.f32 %v934
          %vm941 = vmor %vm939, %vm940
          %v942 = vsel %vm941, %v934, %v938
          %v943 = vand.u32 2147483647, %v933
          %vm944 = vcmp.eq.f32.partialorder %v943, 8.507059e+37
          %v945 = vand.u32 %v933, 2147483648
          %v946 = vor.u32 1.1754944e-38, %v945
          %v947 = vsel %vm944, %v946, %v942
          %v948 = vmul.f32 1.0, %v947
          %v949 = vmul.f32 %v948, 2.0
          %v950 = vld [vmem:[#allocation2] sm:$0xff]
          %v951 = vld [vmem:[#allocation2 + $0x8] sm:$0xff]
          %953 = vset.pattern.permute.xlu0 0
          %954 = vperm.xlu0 %953, %v949
          %v955 = vpop.permute.xlu0 %954
          %v957 = vmul.f32 %v950, %v955
          %v958 = vmul.f32 %v951, %v955
          %v959 = vld [vmem:[%s3] sm:$0x3]
          %v961 = vperm.slane %v959, 0
          %v962 = vperm.slane %v959, 1
          %v965 = vadd.f32 %v957, %v961
          %v966 = vadd.f32 %v958, %v962
          %v967 = vtanh.pop %v965
          %v968 = vtanh.pop %v966
          %v969 = vld [vmem:[#allocation10] sm:$0xff]
          %v970 = vld [vmem:[#allocation10 + $0x8] sm:$0xff]
          %v971 = vld [vmem:[#allocation10 + $0x10] sm:$0xff]
          %v972 = vld [vmem:[#allocation10 + $0x18] sm:$0xff]
          %v973 = vld [vmem:[#allocation10 + $0x20] sm:$0xff]
          %v974 = vld [vmem:[#allocation10 + $0x28] sm:$0xff]
          %v975 = vld [vmem:[#allocation10 + $0x30] sm:$0xff]
          %v976 = vld [vmem:[#allocation10 + $0x38] sm:$0xff]
          %v977 = vld [vmem:[#allocation10 + $0x40] sm:$0xff]
          %v978 = vld [vmem:[#allocation10 + $0x48] sm:$0xff]
          %v979 = vld [vmem:[#allocation10 + $0x50] sm:$0xff]
          %v980 = vld [vmem:[#allocation10 + $0x58] sm:$0xff]
          %v981 = vld [vmem:[#allocation10 + $0x60] sm:$0xff]
          %v982 = vld [vmem:[#allocation10 + $0x68] sm:$0xff]
          %v983 = vld [vmem:[#allocation10 + $0x70] sm:$0xff]
          %v984 = vld [vmem:[#allocation10 + $0x78] sm:$0xff]
          %v985 = vld [vmem:[#allocation10 + $0x80] sm:$0xff]
          %v986 = vld [vmem:[#allocation10 + $0x88] sm:$0xff]
          %v987 = vld [vmem:[#allocation10 + $0x90] sm:$0xff]
          %v988 = vld [vmem:[#allocation10 + $0x98] sm:$0xff]
          %v989 = vld [vmem:[#allocation10 + $0xa0] sm:$0xff]
          %v990 = vld [vmem:[#allocation10 + $0xa8] sm:$0xff]
          %v991 = vld [vmem:[#allocation10 + $0xb0] sm:$0xff]
          %v992 = vld [vmem:[#allocation10 + $0xb8] sm:$0xff]
          %v993 = vld [vmem:[#allocation10 + $0xc0] sm:$0xff]
          %v994 = vld [vmem:[#allocation10 + $0xc8] sm:$0xff]
          %v995 = vld [vmem:[#allocation10 + $0xd0] sm:$0xff]
          %v996 = vld [vmem:[#allocation10 + $0xd8] sm:$0xff]
          %v997 = vld [vmem:[#allocation10 + $0xe0] sm:$0xff]
          %v998 = vld [vmem:[#allocation10 + $0xe8] sm:$0xff]
          %v999 = vld [vmem:[#allocation10 + $0xf0] sm:$0xff]
          %v1000 = vld [vmem:[#allocation10 + $0xf8] sm:$0xff]
          %v1001 = vld [vmem:[%s6] sm:$0x1]
          %v1003 = vperm.slane %v1001, 0
          %1005 = vmatpush.msra.mxu0 %v984
          %1006 = vmatpush.msra.mxu0 %v983
          %1007 = vmatpush.msra.mxu0 %v982
          %1008 = vmatpush.msra.mxu0 %v981
          %1009 = vmatpush.msra.mxu0 %v980
          %1010 = vmatpush.msra.mxu0 %v979
          %1011 = vmatpush.msra.mxu0 %v978
          %1012 = vmatpush.msra.mxu0 %v977
          %1013 = vmatpush.msra.mxu0 %v976
          %1014 = vmatpush.msra.mxu0 %v975
          %1015 = vmatpush.msra.mxu0 %v974
          %1016 = vmatpush.msra.mxu0 %v973
          %1017 = vmatpush.msra.mxu0 %v972
          %1018 = vmatpush.msra.mxu0 %v971
          %1019 = vmatpush.msra.mxu0 %v970
          %1020 = vmatpush.msra.mxu0 %v969
          %1021 = vmatmul.f32.gmra.mxu0 %v967
          %v1022 = vpop.f32.mrf.mxu0
          %v1023 = vadd.f32 %v1003, %v1022
          %1024 = vdwg.mxu0
          %1025 = vmatpush.msra.mxu0 %v1000
          %1026 = vmatpush.msra.mxu0 %v999
          %1027 = vmatpush.msra.mxu0 %v998
          %1028 = vmatpush.msra.mxu0 %v997
          %1029 = vmatpush.msra.mxu0 %v996
          %1030 = vmatpush.msra.mxu0 %v995
          %1031 = vmatpush.msra.mxu0 %v994
          %1032 = vmatpush.msra.mxu0 %v993
          %1033 = vmatpush.msra.mxu0 %v992
          %1034 = vmatpush.msra.mxu0 %v991
          %1035 = vmatpush.msra.mxu0 %v990
          %1036 = vmatpush.msra.mxu0 %v989
          %1037 = vmatpush.msra.mxu0 %v988
          %1038 = vmatpush.msra.mxu0 %v987
          %1039 = vmatpush.msra.mxu0 %v986
          %1040 = vmatpush.msra.mxu0 %v985
          %1041 = vmatmul.f32.gmra.mxu0 %v968
          %v1042 = vpop.f32.mrf.mxu0
          %v1043 = vadd.f32 %v1023, %v1042
          %1044 = vdwg.mxu0
          %v1045 = vld [vmem:[#allocation12] sm:$0xff]
          %v1046 = vld [vmem:[#allocation12 + $0x8] sm:$0xff]
          %v1047 = vld [vmem:[#allocation12 + $0x10] sm:$0xff]
          %v1048 = vld [vmem:[#allocation12 + $0x18] sm:$0xff]
          %v1049 = vld [vmem:[#allocation12 + $0x20] sm:$0xff]
          %v1050 = vld [vmem:[#allocation12 + $0x28] sm:$0xff]
          %v1051 = vld [vmem:[#allocation12 + $0x30] sm:$0xff]
          %v1052 = vld [vmem:[#allocation12 + $0x38] sm:$0xff]
          %v1053 = vld [vmem:[#allocation12 + $0x40] sm:$0xff]
          %v1054 = vld [vmem:[#allocation12 + $0x48] sm:$0xff]
          %v1055 = vld [vmem:[#allocation12 + $0x50] sm:$0xff]
          %v1056 = vld [vmem:[#allocation12 + $0x58] sm:$0xff]
          %v1057 = vld [vmem:[#allocation12 + $0x60] sm:$0xff]
          %v1058 = vld [vmem:[#allocation12 + $0x68] sm:$0xff]
          %v1059 = vld [vmem:[#allocation12 + $0x70] sm:$0xff]
          %v1060 = vld [vmem:[#allocation12 + $0x78] sm:$0xff]
          %v1061 = vld [vmem:[#allocation12 + $0x80] sm:$0xff]
          %v1062 = vld [vmem:[#allocation12 + $0x88] sm:$0xff]
          %v1063 = vld [vmem:[#allocation12 + $0x90] sm:$0xff]
          %v1064 = vld [vmem:[#allocation12 + $0x98] sm:$0xff]
          %v1065 = vld [vmem:[#allocation12 + $0xa0] sm:$0xff]
          %v1066 = vld [vmem:[#allocation12 + $0xa8] sm:$0xff]
          %v1067 = vld [vmem:[#allocation12 + $0xb0] sm:$0xff]
          %v1068 = vld [vmem:[#allocation12 + $0xb8] sm:$0xff]
          %v1069 = vld [vmem:[#allocation12 + $0xc0] sm:$0xff]
          %v1070 = vld [vmem:[#allocation12 + $0xc8] sm:$0xff]
          %v1071 = vld [vmem:[#allocation12 + $0xd0] sm:$0xff]
          %v1072 = vld [vmem:[#allocation12 + $0xd8] sm:$0xff]
          %v1073 = vld [vmem:[#allocation12 + $0xe0] sm:$0xff]
          %v1074 = vld [vmem:[#allocation12 + $0xe8] sm:$0xff]
          %v1075 = vld [vmem:[#allocation12 + $0xf0] sm:$0xff]
          %v1076 = vld [vmem:[#allocation12 + $0xf8] sm:$0xff]
          %v1077 = vld [vmem:[%s7] sm:$0x1]
          %v1079 = vperm.slane %v1077, 0
          %1081 = vmatpush.msra.mxu0 %v1060
          %1082 = vmatpush.msra.mxu0 %v1059
          %1083 = vmatpush.msra.mxu0 %v1058
          %1084 = vmatpush.msra.mxu0 %v1057
          %1085 = vmatpush.msra.mxu0 %v1056
          %1086 = vmatpush.msra.mxu0 %v1055
          %1087 = vmatpush.msra.mxu0 %v1054
          %1088 = vmatpush.msra.mxu0 %v1053
          %1089 = vmatpush.msra.mxu0 %v1052
          %1090 = vmatpush.msra.mxu0 %v1051
          %1091 = vmatpush.msra.mxu0 %v1050
          %1092 = vmatpush.msra.mxu0 %v1049
          %1093 = vmatpush.msra.mxu0 %v1048
          %1094 = vmatpush.msra.mxu0 %v1047
          %1095 = vmatpush.msra.mxu0 %v1046
          %1096 = vmatpush.msra.mxu0 %v1045
          %1097 = vmatmul.f32.gmra.mxu0 %v967
          %v1098 = vpop.f32.mrf.mxu0
          %v1099 = vadd.f32 %v1079, %v1098
          %1100 = vdwg.mxu0
          %1101 = vmatpush.msra.mxu0 %v1076
          %1102 = vmatpush.msra.mxu0 %v1075
          %1103 = vmatpush.msra.mxu0 %v1074
          %1104 = vmatpush.msra.mxu0 %v1073
          %1105 = vmatpush.msra.mxu0 %v1072
          %1106 = vmatpush.msra.mxu0 %v1071
          %1107 = vmatpush.msra.mxu0 %v1070
          %1108 = vmatpush.msra.mxu0 %v1069
          %1109 = vmatpush.msra.mxu0 %v1068
          %1110 = vmatpush.msra.mxu0 %v1067
          %1111 = vmatpush.msra.mxu0 %v1066
          %1112 = vmatpush.msra.mxu0 %v1065
          %1113 = vmatpush.msra.mxu0 %v1064
          %1114 = vmatpush.msra.mxu0 %v1063
          %1115 = vmatpush.msra.mxu0 %v1062
          %1116 = vmatpush.msra.mxu0 %v1061
          %1117 = vmatmul.f32.gmra.mxu0 %v968
          %v1118 = vpop.f32.mrf.mxu0
          %v1119 = vadd.f32 %v1099, %v1118
          %1120 = vdwg.mxu0
          %1121 = vst [vmem:[%s607] sm:$0xff] %v1043
          %1122 = vst [vmem:[%s614] sm:$0xff] %v1119
          %v1123 = vmul.f32 %v1119, 0.5
          %v1124 = vmul.f32 %v1123, 1.442695
          %v1125 = vpow.pop %v1124
          %v1126 = vld [vmem:[%s557] sm:$0xff]
          %v1127 = vmul.f32 %v1126, %v1125
          %v1128 = vadd.f32 %v1043, %v1127
          %1129 = vst [vmem:[%s621] sm:$0xff] %v1128
          %v1130 = vsub.f32 0.0, %v1119
          %v1131 = vmul.f32 %v1119, 1.442695
          %v1132 = vpow.pop %v1131
          %v1133 = vadd.f32 %v1130, %v1132
          %v1134 = vmul.f32 %v1043, %v1043
          %v1135 = vadd.f32 %v1133, %v1134
          %v1136 = vsub.f32 %v1135, 1.0
          %1137 = vadd.xlane.f32.xlu0 %v1136
          %v1138 = vpop.xlane.xlu0 %1137
          %v1139 = vmul.f32 %v1138, 0.5
          %1140 = vst.msk [vmem:[%s634] sm:$0xff] %vm652, %v1139
        $region88: #{tpu_custom_call.1} parent=55 // pred_fallthru
          _
        %s1141 = sand.u32 %s273, 1
        %s1142 = scalar_lea.sflag [#allocation6], %s1141
        %s1143 = sand.u32 %s273, 1
        %s1144 = smul.addr %s1143, 8
        %s1145 = scalar_lea.vmem [#allocation15], %s1144
        %s1146 = sand.u32 %s40, 1
        %s1147 = scalar_lea.sflag [#allocation17], %s1146
        %s1148 = sand.u32 %s299, 1
        %s1149 = smul.addr %s1148, 8
        %s1150 = scalar_lea.vmem [#allocation16], %s1149
        %s1151 = sand.u32 %s40, 1
        %s1152 = scalar_lea.sflag [#allocation17], %s1151
        %s1153 = sand.u32 %s325, 1
        %s1154 = smul.addr %s1153, 8
        %s1155 = scalar_lea.vmem [#allocation18], %s1154
        %p1156 = scmp.lt.s32.totalorder %s44, 1
        %s1157 = scalar_select %p1156, %s44, 1
        %s1158 = smul.addr %s1157, 8
        %s1159 = scalar_lea.vmem %s12, %s1158
        // Predicated region
        $region89: #{tpu_custom_call.1} parent=55 // pred_check
          %p1160 = pneg %p283
        $region90: #{tpu_custom_call.1} parent=55 // pred_check_branch
          %1162 = sbr.rel (%p1160) target = $region92
        $region91: #{tpu_custom_call.1} parent=55 // pred_region
          %1164 = vsyncadd %s1142, 0
          %s1165 = smul.addr %s44, 8
          %s1166 = scalar_lea.hbm %s9, %s1165
          %s1168 = sshll.u32 %s1145, 4
          %s1169 = int_to_ptr.vmem [resolvable:$true] %s1168
          %s1170 = sshll.u32 %s1166, 4
          %s1171 = int_to_ptr.hbm [resolvable:$true] %s1170
          %1173 = dma.vmem_to_hbm [thread:$0]  %s1169, 128, %s1171, %s1142
        $region92: #{tpu_custom_call.1} parent=55 // pred_fallthru
          _
        // Predicated region
        $region93: #{tpu_custom_call.1} parent=55 // pred_check
          %p1174 = pneg %p309
        $region94: #{tpu_custom_call.1} parent=55 // pred_check_branch
          %1176 = sbr.rel (%p1174) target = $region96
        $region95: #{tpu_custom_call.1} parent=55 // pred_region
          %1178 = vsyncadd %s1147, 0
          %s1179 = smul.addr %s44, 8
          %s1180 = scalar_lea.hbm %s10, %s1179
          %s1182 = sshll.u32 %s1150, 4
          %s1183 = int_to_ptr.vmem [resolvable:$true] %s1182
          %s1184 = sshll.u32 %s1180, 4
          %s1185 = int_to_ptr.hbm [resolvable:$true] %s1184
          %1187 = dma.vmem_to_hbm [thread:$0]  %s1183, 128, %s1185, %s1147
        $region96: #{tpu_custom_call.1} parent=55 // pred_fallthru
          _
        // Predicated region
        $region97: #{tpu_custom_call.1} parent=55 // pred_check
          %p1188 = pneg %p335
        $region98: #{tpu_custom_call.1} parent=55 // pred_check_branch
          %1190 = sbr.rel (%p1188) target = $region100
        $region99: #{tpu_custom_call.1} parent=55 // pred_region
          %1192 = vsyncadd %s1152, 0
          %s1193 = smul.addr %s44, 8
          %s1194 = scalar_lea.hbm %s11, %s1193
          %s1196 = sshll.u32 %s1155, 4
          %s1197 = int_to_ptr.vmem [resolvable:$true] %s1196
          %s1198 = sshll.u32 %s1194, 4
          %s1199 = int_to_ptr.hbm [resolvable:$true] %s1198
          %1201 = dma.vmem_to_hbm [thread:$0]  %s1197, 128, %s1199, %s1152
        $region100: #{tpu_custom_call.1} parent=55 // pred_fallthru
          _
        // Predicated region
        $region101: #{tpu_custom_call.1} parent=55 // pred_check
          %p1202 = pneg %p361
        $region102: #{tpu_custom_call.1} parent=55 // pred_check_branch
          %1204 = sbr.rel (%p1202) target = $region104
        $region103: #{tpu_custom_call.1} parent=55 // pred_region
          _
        $region104: #{tpu_custom_call.1} parent=55 // pred_fallthru
          _
      $region56: #{tpu_custom_call.1} parent=5 // pred_fallthru
        _
      %p1205 = scmp.le.s32.totalorder 2, %s35
      // Predicated region
      $region105: #{tpu_custom_call.1} parent=5 // pred_check
        %p1206 = pneg %p1205
      $region106: #{tpu_custom_call.1} parent=5 // pred_check_branch
        %1208 = sbr.rel (%p1206) target = $region108
      $region107: #{tpu_custom_call.1} parent=5 // pred_region
        %s1209 = ssub.s32 %s35, 2
        // Predicated region
        $region109: #{tpu_custom_call.1} parent=107 // pred_check
          %p1210 = pneg %p289
        $region110: #{tpu_custom_call.1} parent=107 // pred_check_branch
          %1212 = sbr.rel (%p1210) target = $region112
        $region111: #{tpu_custom_call.1} parent=107 // pred_region
          %s1213 = sand.u32 %s274, 1
          %s1214 = scalar_lea.sflag [#allocation6], %s1213
          %s1215 = sand.u32 %s274, 1
          %s1216 = smul.addr %s1215, 8
          %s1217 = scalar_lea.vmem [#allocation15], %s1216
          %1219 = dma.done %s1214, 128
        $region112: #{tpu_custom_call.1} parent=107 // pred_fallthru
          _
        // Predicated region
        $region113: #{tpu_custom_call.1} parent=107 // pred_check
          %p1220 = pneg %p315
        $region114: #{tpu_custom_call.1} parent=107 // pred_check_branch
          %1222 = sbr.rel (%p1220) target = $region116
        $region115: #{tpu_custom_call.1} parent=107 // pred_region
          %s1223 = sand.u32 %s41, 1
          %s1224 = scalar_lea.sflag [#allocation17], %s1223
          %s1225 = sand.u32 %s300, 1
          %s1226 = smul.addr %s1225, 8
          %s1227 = scalar_lea.vmem [#allocation16], %s1226
          %1229 = dma.done %s1224, 128
        $region116: #{tpu_custom_call.1} parent=107 // pred_fallthru
          _
        // Predicated region
        $region117: #{tpu_custom_call.1} parent=107 // pred_check
          %p1230 = pneg %p341
        $region118: #{tpu_custom_call.1} parent=107 // pred_check_branch
          %1232 = sbr.rel (%p1230) target = $region120
        $region119: #{tpu_custom_call.1} parent=107 // pred_region
          %s1233 = sand.u32 %s41, 1
          %s1234 = scalar_lea.sflag [#allocation17], %s1233
          %s1235 = sand.u32 %s326, 1
          %s1236 = smul.addr %s1235, 8
          %s1237 = scalar_lea.vmem [#allocation18], %s1236
          %1239 = dma.done %s1234, 128
        $region120: #{tpu_custom_call.1} parent=107 // pred_fallthru
          _
        // Predicated region
        $region121: #{tpu_custom_call.1} parent=107 // pred_check
          %p1240 = pneg %p367
        $region122: #{tpu_custom_call.1} parent=107 // pred_check_branch
          %1242 = sbr.rel (%p1240) target = $region124
        $region123: #{tpu_custom_call.1} parent=107 // pred_region
          %p1243 = scmp.lt.s32.totalorder %s46, 1
          %s1244 = scalar_select %p1243, %s46, 1
          %s1245 = smul.addr %s1244, 8
          %s1246 = scalar_lea.vmem %s12, %s1245
        $region124: #{tpu_custom_call.1} parent=107 // pred_fallthru
          _
      $region108: #{tpu_custom_call.1} parent=5 // pred_fallthru
        _
    $region6: #{tpu_custom_call.1} parent=1 // loop_footer
      %s39 = sadd.s32 1, %s35
    $region7: #{tpu_custom_call.1} parent=1 // loop_footer_branch
      %34 = sbr.rel target = $region3
    $region8: #{tpu_custom_call.1} parent=1 // loop_exit
      _
    %1247 = vsyncpa [#allocation5], 1
    %s1248 = scalar_lea.sflag [#allocation5], 1
    %1249 = vsyncpa %s1248, 1
    %1250 = vsyncpa [#allocation8], 1
    %s1251 = scalar_lea.sflag [#allocation8], 1
    %1252 = vsyncpa %s1251, 1
    %1253 = vsyncpa [#allocation11], 1
    %1254 = vsyncpa [#allocation14], 1
    %s1255 = scalar_lea.sflag [#allocation14], 1
    %1256 = vsyncpa %s1255, 1
    %1257 = vsyncpa [#allocation6], 1
    %s1258 = scalar_lea.sflag [#allocation6], 1
    %1259 = vsyncpa %s1258, 1
    %1260 = vsyncpa [#allocation17], 1
    %s1261 = scalar_lea.sflag [#allocation17], 1
    %1262 = vsyncpa %s1261, 1

</llo_original>
